<compile_context>
chip_gen: v6e
topology: v6e:2x2x1
jax: 0.10.0
libtpu: 0.0.40
codegen_flags: <defaults>
</compile_context>

<pallas_src>
import jax
import jax.numpy as jnp
from jax.experimental import pallas as pl
from jax.experimental.pallas import tpu as pltpu

_BN_EPS = 1e-5
_LANE = 128


def _pad_to(v, m):
    return ((v + m - 1) // m) * m


# ----------------------------- Pallas kernel -------------------------------

def _attention_kernel(g_ref, x_ref, wg_ref, wx_ref, b_ref, wpsi_ref, bpsi_ref, o_ref):
    """One row tile: out = x * sigmoid(psi(relu(g @ Wg + x @ Wx + b)))."""
    x = x_ref[...]                                                     # bf16 (tm, Fl)
    # Two bf16 MXU dots, f32 accumulation.
    t = jnp.dot(g_ref[...], wg_ref[...], preferred_element_type=jnp.float32)
    t = t + jnp.dot(x, wx_ref[...], preferred_element_type=jnp.float32)
    t = jnp.maximum(t + b_ref[...], 0.0)                               # bias + ReLU (VPU)
    # psi: F_int -> 1 as a VPU multiply + XLU lane-reduce (keeps the MXU free);
    # sigmoid on the EUP.  psi bias comes from SMEM.
    p = jnp.sum(t * wpsi_ref[...], axis=-1, keepdims=True) + bpsi_ref[0, 0]
    p = jax.nn.sigmoid(p)
    o_ref[...] = (x.astype(jnp.float32) * p).astype(o_ref.dtype)


# ----------------------------- wrapper --------------------------------------

def _choose_tm(M, row_stream_bytes):
    """Row-tile size: 512-1024 rows (~85% of HBM roofline), VMEM- and grid-aware."""
    # Budget for the double-buffered streamed tiles: safe even under v5e's 16 MiB scoped
    # default and comfortably inside v7x's 64 MiB physical VMEM.
    budget = 12 * 1024 * 1024
    tm = 1024
    while tm > 256 and 2 * tm * row_stream_bytes > budget:
        tm //= 2
    # Keep >= 2 grid steps when there is enough work so the "parallel" axis can
    # load-balance across v7x's 2 TensorCores.
    while tm > 256 and M <= tm:
        tm //= 2
    if M < tm:
        tm = max(8, _pad_to(M, 8))
    return tm


def attention_block_nhwc(g_nhwc, x_nhwc, params):
    """Fused AttentionBlock forward.  g, x: NHWC f32.  Returns NHWC f32 (= x * attention)."""
    wg_b, wx_b, b_comb, wpsi_row, bpsi = params
    N, H, W, Fg = g_nhwc.shape
    Fl = x_nhwc.shape[-1]
    Fip = wg_b.shape[1]
    M = N * H * W

    # Activations stream once, in bf16, with un-padded channel dims (block dim == full
    # array dim is allowed).  The casts fuse with surrounding layout ops under jit; no
    # packed/padded copy of the activations is written to HBM.
    g_flat = g_nhwc.reshape(M, Fg).astype(jnp.bfloat16)
    x_flat = x_nhwc.reshape(M, Fl).astype(jnp.bfloat16)

    row_bytes = Fg * 2 + Fl * 2 + Fl * 4          # g in + x in + f32 out per row
    tm = _choose_tm(M, row_bytes)
    Mp = _pad_to(M, tm)
    if Mp != M:                                   # only pad rows when strictly needed
        g_flat = jnp.pad(g_flat, ((0, Mp - M), (0, 0)))
        x_flat = jnp.pad(x_flat, ((0, Mp - M), (0, 0)))

    out = pl.pallas_call(
        _attention_kernel,
        out_shape=jax.ShapeDtypeStruct((Mp, Fl), jnp.float32),
        grid_spec=pltpu.PrefetchScalarGridSpec(
            num_scalar_prefetch=0,
            grid=(Mp // tm,),
            in_specs=[
                pl.BlockSpec((tm, Fg), lambda i: (i, 0)),          # g tile
                pl.BlockSpec((tm, Fl), lambda i: (i, 0)),          # x tile (matmul + gate)
                pl.BlockSpec((Fg, Fip), lambda i: (0, 0)),         # Wg (grid-invariant)
                pl.BlockSpec((Fl, Fip), lambda i: (0, 0)),         # Wx (grid-invariant)
                pl.BlockSpec((1, Fip), lambda i: (0, 0)),          # combined bias
                pl.BlockSpec((1, Fip), lambda i: (0, 0)),          # psi weight row
                pl.BlockSpec(memory_space=pltpu.MemorySpace.SMEM), # psi bias scalar
            ],
            out_specs=pl.BlockSpec((tm, Fl), lambda i: (i, 0))),
        compiler_params=pltpu.CompilerParams(
            dimension_semantics=("parallel",),
            vmem_limit_bytes=32 * 1024 * 1024),
    )(g_flat, x_flat, wg_b, wx_b, b_comb, wpsi_row, bpsi)
    return out[:M].reshape(N, H, W, Fl)


def attention_block(g_nchw, x_nchw, params):
    """NCHW wrapper matching the PyTorch module interface.

    Prefer `attention_block_nhwc` when the surrounding model is kept in NHWC — the
    transposes here are pure layout plumbing (extra activation-sized HBM passes).
    """
    g = jnp.transpose(g_nchw, (0, 2, 3, 1))
    x = jnp.transpose(x_nchw, (0, 2, 3, 1))
    out = attention_block_nhwc(g, x, params)
    return jnp.transpose(out, (0, 3, 1, 2))


# ----------------------------- parameters ----------------------------------

class KeyGen:
    def __init__(self, key):
        self._key = key

    def __call__(self):
        self._key, k = jax.random.split(self._key)
        return k


def _conv1x1(kg, cout, cin):
    w = jax.random.normal(kg(), (cout, cin), jnp.float32) * (cin ** -0.5)
    b = jax.random.normal(kg(), (cout,), jnp.float32) * 0.01
    return w, b


def _bn(kg, c):
    gamma = 1.0 + 0.1 * jax.random.normal(kg(), (c,), jnp.float32)
    beta = 0.1 * jax.random.normal(kg(), (c,), jnp.float32)
    mean = 0.1 * jax.random.normal(kg(), (c,), jnp.float32)
    var = 1.0 + 0.5 * jax.random.uniform(kg(), (c,), jnp.float32)
    return gamma, beta, mean, var


def _fold_bn(wmat, b, bn):
    """wmat: (Cin, Cout), b: (Cout,) -> eval-mode BN folded into the conv."""
    gamma, beta, mean, var = bn
    s = gamma * jax.lax.rsqrt(var + _BN_EPS)
    return wmat * s[None, :], (b - mean) * s + beta


def make_attention_params(key, F_g, F_l, F_int):
    kg = KeyGen(key)
    wg, bg = _conv1x1(kg, F_int, F_g)        # torch Conv2d weight (F_int, F_g)
    bng = _bn(kg, F_int)
    wx, bx = _conv1x1(kg, F_int, F_l)
    bnx = _bn(kg, F_int)
    wp, bp = _conv1x1(kg, 1, F_int)
    bnp = _bn(kg, 1)

    wg_f, bg_f = _fold_bn(wg.T, bg, bng)     # (F_g, F_int)
    wx_f, bx_f = _fold_bn(wx.T, bx, bnx)     # (F_l, F_int)
    wp_f, bp_f = _fold_bn(wp.T, bp, bnp)     # (F_int, 1), (1,)

    # Only the tiny grid-invariant weights are padded (F_int lane dim -> 128 multiple) and
    # pre-cast to bf16; their K dims stay un-padded so activations stream un-padded.
    Fip = _pad_to(F_int, _LANE)
    wg_b = jnp.zeros((F_g, Fip), jnp.float32).at[:, :F_int].set(wg_f).astype(jnp.bfloat16)
    wx_b = jnp.zeros((F_l, Fip), jnp.float32).at[:, :F_int].set(wx_f).astype(jnp.bfloat16)
    b_comb = jnp.zeros((1, Fip), jnp.float32).at[0, :F_int].set(bg_f + bx_f)
    wpsi_row = jnp.zeros((1, Fip), jnp.float32).at[0, :F_int].set(wp_f[:, 0])
    bpsi = bp_f.reshape(1, 1)

    folded_f32 = (wg_f, bg_f, wx_f, bx_f, wp_f, bp_f)   # for the pure-JAX reference
    return (wg_b, wx_b, b_comb, wpsi_row, bpsi), folded_f32


# ----------------------------- pure-JAX reference ---------------------------

def attention_block_ref(g_nchw, x_nchw, folded):
    wg_f, bg_f, wx_f, bx_f, wp_f, bp_f = folded
    N, Fg, H, W = g_nchw.shape
    Fl = x_nchw.shape[1]
    g = jnp.transpose(g_nchw, (0, 2, 3, 1)).reshape(-1, Fg)
    x = jnp.transpose(x_nchw, (0, 2, 3, 1)).reshape(-1, Fl)
    t = jnp.maximum(g @ wg_f + bg_f + x @ wx_f + bx_f, 0.0)
    p = jax.nn.sigmoid(t @ wp_f + bp_f)
    out = (x * p).reshape(N, H, W, Fl)
    return jnp.transpose(out, (0, 3, 1, 2))


# ----------------------------- main -----------------------------------------

if __name__ == "__main__":
    key = jax.random.PRNGKey(0)
    k_g, k_x, k_p = jax.random.split(key, 3)
    N, F_g, F_l, F_int, H, W = 2, 32, 32, 16, 16, 16
    g = jax.random.normal(k_g, (N, F_g, H, W), jnp.float32)   # gating signal (NCHW)
    x = jax.random.normal(k_x, (N, F_l, H, W), jnp.float32)   # skip features  (NCHW)
    params, folded = make_attention_params(k_p, F_g, F_l, F_int)

    fwd = jax.jit(attention_block)
    y = jax.block_until_ready(fwd(g, x, params))
    assert y.shape == (N, F_l, H, W), y.shape
    assert bool(jnp.all(jnp.isfinite(y)))

    # bf16 activations/weights on the MXU path and bf16 x in the gating multiply,
    # f32 accumulation -> relaxed tolerance vs the f32 reference.
    y_ref = attention_block_ref(g, x, folded)
    err = float(jnp.max(jnp.abs(y - y_ref)))
    assert err < 5e-2, f"max abs err {err}"
    print("KERNEL_OK")
</pallas_src>

<mosaic_0001>
module attributes {stable_mosaic.version = 11 : i64} {
  func.func @_attention_kernel(%arg0: i32, %arg1: memref<256x32xbf16, #tpu.memory_space<vmem>>, %arg2: memref<256x32xbf16, #tpu.memory_space<vmem>>, %arg3: memref<32x128xbf16, #tpu.memory_space<vmem>>, %arg4: memref<32x128xbf16, #tpu.memory_space<vmem>>, %arg5: memref<1x128xf32, #tpu.memory_space<vmem>>, %arg6: memref<1x128xf32, #tpu.memory_space<vmem>>, %arg7: memref<1x1xf32, #tpu.memory_space<smem>>, %arg8: memref<256x32xf32, #tpu.memory_space<vmem>>) attributes {dimension_semantics = [#tpu.dimension_semantics<parallel>], iteration_bounds = array<i64: 2>, scalar_prefetch = 0 : i64, scratch_operands = 0 : i64, tpu.core_type = #tpu.core_type<tc>, window_params = [{transform_indices = @transform_0, window_bounds = array<i64: 256, 32>}, {transform_indices = @transform_1, window_bounds = array<i64: 256, 32>}, {pipeline_mode = #tpu.pipeline_mode<synchronous>, transform_indices = @transform_2, window_bounds = array<i64: 32, 128>}, {pipeline_mode = #tpu.pipeline_mode<synchronous>, transform_indices = @transform_3, window_bounds = array<i64: 32, 128>}, {pipeline_mode = #tpu.pipeline_mode<synchronous>, transform_indices = @transform_4, window_bounds = array<i64: 1, 128>}, {pipeline_mode = #tpu.pipeline_mode<synchronous>, transform_indices = @transform_5, window_bounds = array<i64: 1, 128>}, {transform_indices = @transform_6, window_bounds = array<i64: 1, 1>}, {transform_indices = @transform_7, window_bounds = array<i64: 256, 32>}]} {
    %c0 = arith.constant 0 : index
    %c0_0 = arith.constant 0 : index
    %0 = vector.load %arg2[%c0, %c0_0] : memref<256x32xbf16, #tpu.memory_space<vmem>>, vector<256x32xbf16>
    %c0_1 = arith.constant 0 : index
    %c0_2 = arith.constant 0 : index
    %1 = vector.load %arg1[%c0_1, %c0_2] : memref<256x32xbf16, #tpu.memory_space<vmem>>, vector<256x32xbf16>
    %c0_3 = arith.constant 0 : index
    %c0_4 = arith.constant 0 : index
    %2 = vector.load %arg3[%c0_3, %c0_4] : memref<32x128xbf16, #tpu.memory_space<vmem>>, vector<32x128xbf16>
    %cst = arith.constant dense<0.000000e+00> : vector<256x128xf32>
    %3 = tpu.matmul %1, %2, %cst {dimension_numbers = #tpu.dot_dimension_numbers<[1], [0], [0], [1], [0, 0, 1, 1], [], []>} : vector<256x32xbf16>, vector<32x128xbf16>, vector<256x128xf32> -> vector<256x128xf32>
    %c0_5 = arith.constant 0 : index
    %c0_6 = arith.constant 0 : index
    %4 = vector.load %arg4[%c0_5, %c0_6] : memref<32x128xbf16, #tpu.memory_space<vmem>>, vector<32x128xbf16>
    %cst_7 = arith.constant dense<0.000000e+00> : vector<256x128xf32>
    %5 = tpu.matmul %0, %4, %cst_7 {dimension_numbers = #tpu.dot_dimension_numbers<[1], [0], [0], [1], [0, 0, 1, 1], [], []>} : vector<256x32xbf16>, vector<32x128xbf16>, vector<256x128xf32> -> vector<256x128xf32>
    %6 = arith.addf %3, %5 : vector<256x128xf32>
    %c0_8 = arith.constant 0 : index
    %c0_9 = arith.constant 0 : index
    %7 = vector.load %arg5[%c0_8, %c0_9] : memref<1x128xf32, #tpu.memory_space<vmem>>, vector<1x128xf32>
    %8 = vector.broadcast %7 : vector<1x128xf32> to vector<256x128xf32>
    %9 = arith.addf %6, %8 : vector<256x128xf32>
    %cst_10 = arith.constant 0.000000e+00 : f32
    %10 = vector.broadcast %cst_10 : f32 to vector<256x128xf32>
    %11 = arith.maximumf %9, %10 : vector<256x128xf32>
    %c0_11 = arith.constant 0 : index
    %c0_12 = arith.constant 0 : index
    %12 = vector.load %arg6[%c0_11, %c0_12] : memref<1x128xf32, #tpu.memory_space<vmem>>, vector<1x128xf32>
    %13 = vector.broadcast %12 : vector<1x128xf32> to vector<256x128xf32>
    %14 = arith.mulf %11, %13 : vector<256x128xf32>
    %cst_13 = arith.constant dense<0.000000e+00> : vector<256xf32>
    %15 = vector.multi_reduction <add>, %14, %cst_13 [1] : vector<256x128xf32> to vector<256xf32>
    %16 = vector.shape_cast %15 : vector<256xf32> to vector<256x1xf32>
    %c0_14 = arith.constant 0 : index
    %c0_15 = arith.constant 0 : index
    %17 = memref.load %arg7[%c0_14, %c0_15] : memref<1x1xf32, #tpu.memory_space<smem>>
    %18 = vector.broadcast %17 : f32 to vector<256x1xf32>
    %19 = arith.addf %16, %18 : vector<256x1xf32>
    %20 = arith.negf %19 : vector<256x1xf32>
    %21 = math.exp %20 : vector<256x1xf32>
    %cst_16 = arith.constant 1.000000e+00 : f32
    %22 = vector.broadcast %cst_16 : f32 to vector<256x1xf32>
    %23 = arith.addf %22, %21 : vector<256x1xf32>
    %24 = arith.divf %22, %23 : vector<256x1xf32>
    %25 = arith.extf %0 : vector<256x32xbf16> to vector<256x32xf32>
    %26 = vector.broadcast %24 : vector<256x1xf32> to vector<256x32xf32>
    %27 = arith.mulf %25, %26 : vector<256x32xf32>
    %c0_17 = arith.constant 0 : index
    %c0_18 = arith.constant 0 : index
    %28 = vector.load %arg8[%c0_17, %c0_18] : memref<256x32xf32, #tpu.memory_space<vmem>>, vector<256x32xf32>
    tpu.vector_store %arg8[%c0_17, %c0_18], %27 {strides = array<i32>} : memref<256x32xf32, #tpu.memory_space<vmem>>, vector<256x32xf32>,
    return
  }
  func.func @transform_0(%arg0: i32) -> (i32, i32) {
    %c0_i32 = arith.constant 0 : i32
    %c0_i32_0 = arith.constant 0 : i32
    return %arg0, %c0_i32 : i32, i32
  }
  func.func @transform_1(%arg0: i32) -> (i32, i32) {
    %c0_i32 = arith.constant 0 : i32
    %c0_i32_0 = arith.constant 0 : i32
    return %arg0, %c0_i32 : i32, i32
  }
  func.func @transform_2(%arg0: i32) -> (i32, i32) {
    %c0_i32 = arith.constant 0 : i32
    %c0_i32_0 = arith.constant 0 : i32
    %c0_i32_1 = arith.constant 0 : i32
    return %c0_i32, %c0_i32_0 : i32, i32
  }
  func.func @transform_3(%arg0: i32) -> (i32, i32) {
    %c0_i32 = arith.constant 0 : i32
    %c0_i32_0 = arith.constant 0 : i32
    %c0_i32_1 = arith.constant 0 : i32
    return %c0_i32, %c0_i32_0 : i32, i32
  }
  func.func @transform_4(%arg0: i32) -> (i32, i32) {
    %c0_i32 = arith.constant 0 : i32
    %c0_i32_0 = arith.constant 0 : i32
    %c0_i32_1 = arith.constant 0 : i32
    return %c0_i32, %c0_i32_0 : i32, i32
  }
  func.func @transform_5(%arg0: i32) -> (i32, i32) {
    %c0_i32 = arith.constant 0 : i32
    %c0_i32_0 = arith.constant 0 : i32
    %c0_i32_1 = arith.constant 0 : i32
    return %c0_i32, %c0_i32_0 : i32, i32
  }
  func.func @transform_6(%arg0: i32) -> (i32, i32) {
    %c0_i32 = arith.constant 0 : i32
    %c0_i32_0 = arith.constant 0 : i32
    %c0_i32_1 = arith.constant 0 : i32
    return %c0_i32, %c0_i32_0 : i32, i32
  }
  func.func @transform_7(%arg0: i32) -> (i32, i32) {
    %c0_i32 = arith.constant 0 : i32
    %c0_i32_0 = arith.constant 0 : i32
    return %arg0, %c0_i32 : i32, i32
  }
}

</mosaic_0001>

<llo_original>
// kernel: attention_block.1
$region0: #{attention_block.1}
  #allocation0 [shape = 'u32[]', space=smem, size = 0x4, offset = 0x4, fixed_abs, tag = 'smem constant byte address 0x4 - core index']
  #allocation1 [shape = 'u32[144,128]{1,0:T(1,128)}', space=vmem, size = 0x12000, scoped, tag = 'internal scratch']
  #allocation2 [shape = 'f32[1,1]{1,0:T(1,128)S(6)}', space=smem, size = 0x200, scoped, tag = 'scoped memory for attention_block.1']
  %s0 = inlined_call_operand.vmem [shape: bf16[512,32], index: 0, kind: input, shape index: {}]
  %s1 = inlined_call_operand.vmem [shape: bf16[512,32], index: 1, kind: input, shape index: {}]
  %s2 = inlined_call_operand.vmem [shape: bf16[32,128], index: 2, kind: input, shape index: {}]
  %s3 = inlined_call_operand.vmem [shape: bf16[32,128], index: 3, kind: input, shape index: {}]
  %s4 = inlined_call_operand.vmem [shape: f32[1,128], index: 4, kind: input, shape index: {}]
  %s5 = inlined_call_operand.vmem [shape: f32[1,128], index: 5, kind: input, shape index: {}]
  %s6 = inlined_call_operand.<no memory space> [shape: f32[1,1], index: 6, kind: input, shape index: {}]
  %s7 = inlined_call_operand.hbm [shape: f32[512,32], index: 7, kind: output, shape index: {}]
  %s8 = sld [smem:[#allocation0]]
  $region61: #{attention_block.1} parent=0
    _
  %s10 = ssub.s32 1, %s8
  %s11 = scalar_select 0, %s10, %s8
  %12 = sst [smem:[#allocation2]] %s6
  $region1: #{attention_block.1} parent=0
    #allocation3 [shape = 'u8[262144]{0}', space=vmem, size = 0x40000, scoped, tag = 'output window, operand 0']
    #allocation4 [shape = 's32[2]{0}', space=sflag, size = 0x8, scoped, tag = 'scoped memory for attention_block.1']
    %13 = vsyncpa [#allocation4], 0
    %s14 = scalar_lea.sflag [#allocation4], 1
    %15 = vsyncpa %s14, 0
    loop: start=0, step=1, limit=4
    $region2: #{attention_block.1} parent=1 // loop_pre_header
      _
    $region3: #{attention_block.1} parent=1 // loop_header
      %s17 = sphi 0, %s21
      %p18 = scmp.ge.s32.totalorder %s17, 4
      %s27 = sphi 0, %s29
      %s30 = sphi 0, %s27
      %s31 = sphi 0, %s30
      %s47 = sphi 0, %s31
      %s53 = sphi 0, %s55
      %s56 = sphi 0, %s53
      %s57 = sphi 0, %s56
      %s73 = sphi 0, %s57
      %s77 = sphi 0, %s77
      %s79 = sphi 0, %s77
      %s80 = sphi 0, %s79
      %s94 = sphi 0, %s80
      %s98 = sphi 0, %s98
      %s100 = sphi 0, %s98
      %s101 = sphi 0, %s100
      %s115 = sphi 0, %s101
      %s119 = sphi 0, %s119
      %s121 = sphi 0, %s119
      %s122 = sphi 0, %s121
      %s136 = sphi 0, %s122
      %s140 = sphi 0, %s140
      %s142 = sphi 0, %s140
      %s143 = sphi 0, %s142
      %s157 = sphi 0, %s143
      %s161 = sphi 0, %s161
      %s163 = sphi 0, %s161
      %s164 = sphi 0, %s163
      %s178 = sphi 0, %s164
      %s184 = sphi 0, %s186
      %s187 = sphi 0, %s184
      %s188 = sphi 0, %s187
      %s204 = sphi 0, %s188
    $region4: #{attention_block.1} parent=1 // loop_header_branch
      %20 = sbr.rel (%p18) target = $region8
    $region5: #{attention_block.1} parent=1 // loop_body
      %s22 = ssub.s32 %s17, 1
      %s23 = ssub.s32 %s17, 2
      %s24 = sadd.s32 %s17, 1
      %s25 = ssub.s32 %s17, %s24
      %p26 = scmp.eq.s32.totalorder %s25, 0
      %s28 = sadd.s32 %s27, 1
      %s29 = scalar_select %p26, %s27, %s28
      %p32 = pneg %p26
      %p33 = scmp.eq.s32.totalorder %s17, 1
      %p34 = por %p32, %p33
      %p35 = scmp.ne.s32.totalorder %s27, %s30
      %p36 = scmp.eq.s32.totalorder %s17, 0
      %p37 = por %p35, %p36
      %p38 = scmp.ne.s32.totalorder %s27, %s30
      %p39 = scmp.eq.s32.totalorder %s22, 1
      %p40 = por %p38, %p39
      %p41 = scmp.ne.s32.totalorder %s30, %s31
      %p42 = scmp.eq.s32.totalorder %s22, 0
      %p43 = por %p41, %p42
      %p44 = scmp.ne.s32.totalorder %s30, %s31
      %p45 = scmp.eq.s32.totalorder %s23, 1
      %p46 = por %p44, %p45
      %p48 = scmp.ne.s32.totalorder %s31, %s47
      %p49 = scmp.eq.s32.totalorder %s23, 0
      %p50 = por %p48, %p49
      %s51 = ssub.s32 %s17, %s24
      %p52 = scmp.eq.s32.totalorder %s51, 0
      %s54 = sadd.s32 %s53, 1
      %s55 = scalar_select %p52, %s53, %s54
      %p58 = pneg %p52
      %p59 = scmp.eq.s32.totalorder %s17, 1
      %p60 = por %p58, %p59
      %p61 = scmp.ne.s32.totalorder %s53, %s56
      %p62 = scmp.eq.s32.totalorder %s17, 0
      %p63 = por %p61, %p62
      %p64 = scmp.ne.s32.totalorder %s53, %s56
      %p65 = scmp.eq.s32.totalorder %s22, 1
      %p66 = por %p64, %p65
      %p67 = scmp.ne.s32.totalorder %s56, %s57
      %p68 = scmp.eq.s32.totalorder %s22, 0
      %p69 = por %p67, %p68
      %p70 = scmp.ne.s32.totalorder %s56, %s57
      %p71 = scmp.eq.s32.totalorder %s23, 1
      %p72 = por %p70, %p71
      %p74 = scmp.ne.s32.totalorder %s57, %s73
      %p75 = scmp.eq.s32.totalorder %s23, 0
      %p76 = por %p74, %p75
      %s78 = sadd.s32 %s77, 1
      %p81 = scmp.eq.s32.totalorder %s17, 1
      %p82 = scmp.ne.s32.totalorder %s77, %s79
      %p83 = scmp.eq.s32.totalorder %s17, 0
      %p84 = por %p82, %p83
      %p85 = scmp.ne.s32.totalorder %s77, %s79
      %p86 = scmp.eq.s32.totalorder %s22, 1
      %p87 = por %p85, %p86
      %p88 = scmp.ne.s32.totalorder %s79, %s80
      %p89 = scmp.eq.s32.totalorder %s22, 0
      %p90 = por %p88, %p89
      %p91 = scmp.ne.s32.totalorder %s79, %s80
      %p92 = scmp.eq.s32.totalorder %s23, 1
      %p93 = por %p91, %p92
      %p95 = scmp.ne.s32.totalorder %s80, %s94
      %p96 = scmp.eq.s32.totalorder %s23, 0
      %p97 = por %p95, %p96
      %s99 = sadd.s32 %s98, 1
      %p102 = scmp.eq.s32.totalorder %s17, 1
      %p103 = scmp.ne.s32.totalorder %s98, %s100
      %p104 = scmp.eq.s32.totalorder %s17, 0
      %p105 = por %p103, %p104
      %p106 = scmp.ne.s32.totalorder %s98, %s100
      %p107 = scmp.eq.s32.totalorder %s22, 1
      %p108 = por %p106, %p107
      %p109 = scmp.ne.s32.totalorder %s100, %s101
      %p110 = scmp.eq.s32.totalorder %s22, 0
      %p111 = por %p109, %p110
      %p112 = scmp.ne.s32.totalorder %s100, %s101
      %p113 = scmp.eq.s32.totalorder %s23, 1
      %p114 = por %p112, %p113
      %p116 = scmp.ne.s32.totalorder %s101, %s115
      %p117 = scmp.eq.s32.totalorder %s23, 0
      %p118 = por %p116, %p117
      %s120 = sadd.s32 %s119, 1
      %p123 = scmp.eq.s32.totalorder %s17, 1
      %p124 = scmp.ne.s32.totalorder %s119, %s121
      %p125 = scmp.eq.s32.totalorder %s17, 0
      %p126 = por %p124, %p125
      %p127 = scmp.ne.s32.totalorder %s119, %s121
      %p128 = scmp.eq.s32.totalorder %s22, 1
      %p129 = por %p127, %p128
      %p130 = scmp.ne.s32.totalorder %s121, %s122
      %p131 = scmp.eq.s32.totalorder %s22, 0
      %p132 = por %p130, %p131
      %p133 = scmp.ne.s32.totalorder %s121, %s122
      %p134 = scmp.eq.s32.totalorder %s23, 1
      %p135 = por %p133, %p134
      %p137 = scmp.ne.s32.totalorder %s122, %s136
      %p138 = scmp.eq.s32.totalorder %s23, 0
      %p139 = por %p137, %p138
      %s141 = sadd.s32 %s140, 1
      %p144 = scmp.eq.s32.totalorder %s17, 1
      %p145 = scmp.ne.s32.totalorder %s140, %s142
      %p146 = scmp.eq.s32.totalorder %s17, 0
      %p147 = por %p145, %p146
      %p148 = scmp.ne.s32.totalorder %s140, %s142
      %p149 = scmp.eq.s32.totalorder %s22, 1
      %p150 = por %p148, %p149
      %p151 = scmp.ne.s32.totalorder %s142, %s143
      %p152 = scmp.eq.s32.totalorder %s22, 0
      %p153 = por %p151, %p152
      %p154 = scmp.ne.s32.totalorder %s142, %s143
      %p155 = scmp.eq.s32.totalorder %s23, 1
      %p156 = por %p154, %p155
      %p158 = scmp.ne.s32.totalorder %s143, %s157
      %p159 = scmp.eq.s32.totalorder %s23, 0
      %p160 = por %p158, %p159
      %s162 = sadd.s32 %s161, 1
      %p165 = scmp.eq.s32.totalorder %s17, 1
      %p166 = scmp.ne.s32.totalorder %s161, %s163
      %p167 = scmp.eq.s32.totalorder %s17, 0
      %p168 = por %p166, %p167
      %p169 = scmp.ne.s32.totalorder %s161, %s163
      %p170 = scmp.eq.s32.totalorder %s22, 1
      %p171 = por %p169, %p170
      %p172 = scmp.ne.s32.totalorder %s163, %s164
      %p173 = scmp.eq.s32.totalorder %s22, 0
      %p174 = por %p172, %p173
      %p175 = scmp.ne.s32.totalorder %s163, %s164
      %p176 = scmp.eq.s32.totalorder %s23, 1
      %p177 = por %p175, %p176
      %p179 = scmp.ne.s32.totalorder %s164, %s178
      %p180 = scmp.eq.s32.totalorder %s23, 0
      %p181 = por %p179, %p180
      %s182 = ssub.s32 %s17, %s24
      %p183 = scmp.eq.s32.totalorder %s182, 0
      %s185 = sadd.s32 %s184, 1
      %s186 = scalar_select %p183, %s184, %s185
      %p189 = pneg %p183
      %p190 = scmp.eq.s32.totalorder %s17, 1
      %p191 = por %p189, %p190
      %p192 = scmp.ne.s32.totalorder %s184, %s187
      %p193 = scmp.eq.s32.totalorder %s17, 0
      %p194 = por %p192, %p193
      %p195 = scmp.ne.s32.totalorder %s184, %s187
      %p196 = scmp.eq.s32.totalorder %s22, 1
      %p197 = por %p195, %p196
      %p198 = scmp.ne.s32.totalorder %s187, %s188
      %p199 = scmp.eq.s32.totalorder %s22, 0
      %p200 = por %p198, %p199
      %p201 = scmp.ne.s32.totalorder %s187, %s188
      %p202 = scmp.eq.s32.totalorder %s23, 1
      %p203 = por %p201, %p202
      %p205 = scmp.ne.s32.totalorder %s188, %s204
      %p206 = scmp.eq.s32.totalorder %s23, 0
      %p207 = por %p205, %p206
      %p208 = scmp.le.s32.totalorder 1, %s17
      %p209 = scmp.lt.s32.totalorder %s17, 3
      %p210 = pnand %p208, %p209
      %p211 = pneg %p210
      // Predicated region
      $region9: #{attention_block.1} parent=5 // pred_check
        _
      $region10: #{attention_block.1} parent=5 // pred_check_branch
        %213 = sbr.rel (%p210) target = $region12
      $region11: #{attention_block.1} parent=5 // pred_region
        %s214 = ssub.s32 %s17, 1
        // Predicated region
        $region13: #{attention_block.1} parent=11 // pred_check
          %p215 = pneg %p90
        $region14: #{attention_block.1} parent=11 // pred_check_branch
          %217 = sbr.rel (%p215) target = $region16
        $region15: #{attention_block.1} parent=11 // pred_region
          _
        $region16: #{attention_block.1} parent=11 // pred_fallthru
          _
        // Predicated region
        $region17: #{attention_block.1} parent=11 // pred_check
          %p218 = pneg %p111
        $region18: #{attention_block.1} parent=11 // pred_check_branch
          %220 = sbr.rel (%p218) target = $region20
        $region19: #{attention_block.1} parent=11 // pred_region
          _
        $region20: #{attention_block.1} parent=11 // pred_fallthru
          _
        // Predicated region
        $region21: #{attention_block.1} parent=11 // pred_check
          %p221 = pneg %p132
        $region22: #{attention_block.1} parent=11 // pred_check_branch
          %223 = sbr.rel (%p221) target = $region24
        $region23: #{attention_block.1} parent=11 // pred_region
          _
        $region24: #{attention_block.1} parent=11 // pred_fallthru
          _
        // Predicated region
        $region25: #{attention_block.1} parent=11 // pred_check
          %p224 = pneg %p153
        $region26: #{attention_block.1} parent=11 // pred_check_branch
          %226 = sbr.rel (%p224) target = $region28
        $region27: #{attention_block.1} parent=11 // pred_region
          _
        $region28: #{attention_block.1} parent=11 // pred_fallthru
          _
        // Predicated region
        $region29: #{attention_block.1} parent=11 // pred_check
          %p227 = pneg %p174
        $region30: #{attention_block.1} parent=11 // pred_check_branch
          %229 = sbr.rel (%p227) target = $region32
        $region31: #{attention_block.1} parent=11 // pred_region
          _
        $region32: #{attention_block.1} parent=11 // pred_fallthru
          _
      $region12: #{attention_block.1} parent=5 // pred_fallthru
        _
      %p230 = scmp.lt.s32.totalorder %s17, 2
      // Predicated region
      $region33: #{attention_block.1} parent=5 // pred_check
        %p231 = pneg %p230
      $region34: #{attention_block.1} parent=5 // pred_check_branch
        %233 = sbr.rel (%p231) target = $region36
      $region35: #{attention_block.1} parent=5 // pred_region
        // Predicated region
        $region37: #{attention_block.1} parent=35 // pred_check
          %p234 = pneg %p37
        $region38: #{attention_block.1} parent=35 // pred_check_branch
          %236 = sbr.rel (%p234) target = $region40
        $region39: #{attention_block.1} parent=35 // pred_region
          %s237 = smul.u32 32, %s17
          %p238 = scmp.lt.s32.totalorder %s237, 63
          %s239 = scalar_select %p238, %s237, 63
          %s240 = smul.addr %s239, 4
          %s241 = scalar_lea.vmem %s0, %s240
          %s242 = smul.u32 32, %s17
        $region40: #{attention_block.1} parent=35 // pred_fallthru
          _
        // Predicated region
        $region41: #{attention_block.1} parent=35 // pred_check
          %p243 = pneg %p63
        $region42: #{attention_block.1} parent=35 // pred_check_branch
          %245 = sbr.rel (%p243) target = $region44
        $region43: #{attention_block.1} parent=35 // pred_region
          %s246 = smul.u32 32, %s17
          %p247 = scmp.lt.s32.totalorder %s246, 63
          %s248 = scalar_select %p247, %s246, 63
          %s249 = smul.addr %s248, 4
          %s250 = scalar_lea.vmem %s1, %s249
          %s251 = smul.u32 32, %s17
        $region44: #{attention_block.1} parent=35 // pred_fallthru
          _
      $region36: #{attention_block.1} parent=5 // pred_fallthru
        _
      %p252 = scmp.le.s32.totalorder 1, %s17
      %p253 = scmp.lt.s32.totalorder %s17, 3
      %p254 = pnand %p252, %p253
      %p255 = pneg %p254
      // Predicated region
      $region45: #{attention_block.1} parent=5 // pred_check
        _
      $region46: #{attention_block.1} parent=5 // pred_check_branch
        %257 = sbr.rel (%p254) target = $region48
      $region47: #{attention_block.1} parent=5 // pred_region
        %s258 = ssub.s32 %s17, 1
        %s259 = smul.u32 32, %s22
        %p260 = scmp.lt.s32.totalorder %s259, 63
        %s261 = scalar_select %p260, %s259, 63
        %s262 = smul.addr %s261, 4
        %s263 = scalar_lea.vmem %s0, %s262
        %p264 = pneg %p43
        %p265 = pneg %p40
        %s266 = smul.u32 32, %s22
        %p267 = scmp.lt.s32.totalorder %s266, 63
        %s268 = scalar_select %p267, %s266, 63
        %s269 = smul.addr %s268, 4
        %s270 = scalar_lea.vmem %s1, %s269
        %p271 = pneg %p69
        %p272 = pneg %p66
        %p273 = pneg %p90
        %p274 = pneg %p87
        %p275 = pneg %p111
        %p276 = pneg %p108
        %p277 = pneg %p132
        %p278 = pneg %p129
        %p279 = pneg %p153
        %p280 = pneg %p150
        %p281 = pneg %p174
        %p282 = pneg %p171
        %p283 = pneg %p200
        %p284 = pneg %p197
        %s285 = sand.u32 %s187, 1
        %s286 = scalar_lea.sflag [#allocation4], %s285
        %s287 = sand.u32 %s187, 1
        %s288 = smul.addr %s287, 256
        %s289 = scalar_lea.vmem [#allocation3], %s288
        %s290 = smul.u32 32, %s22
        %p291 = scmp.lt.s32.totalorder %s290, 63
        %s292 = scalar_select %p291, %s290, 63
        %s293 = smul.addr %s292, 4
        %s294 = scalar_lea.vmem %s0, %s293
        %s295 = smul.u32 32, %s22
        %s296 = smul.u32 32, %s22
        %p297 = scmp.lt.s32.totalorder %s296, 63
        %s298 = scalar_select %p297, %s296, 63
        %s299 = smul.addr %s298, 4
        %s300 = scalar_lea.vmem %s1, %s299
        %s301 = smul.u32 32, %s22
        %s302 = smul.u32 32, %s22
        %v304 = vld [vmem:[%s300] sm:$0xf]
        %v305 = vld [vmem:[%s300 + $0x4] sm:$0xf]
        %v306 = vld [vmem:[%s300 + $0x8] sm:$0xf]
        %v307 = vld [vmem:[%s300 + $0xc] sm:$0xf]
        %v308 = vld [vmem:[%s300 + $0x10] sm:$0xf]
        %v309 = vld [vmem:[%s300 + $0x14] sm:$0xf]
        %v310 = vld [vmem:[%s300 + $0x18] sm:$0xf]
        %v311 = vld [vmem:[%s300 + $0x1c] sm:$0xf]
        %v312 = vld [vmem:[%s300 + $0x20] sm:$0xf]
        %v313 = vld [vmem:[%s300 + $0x24] sm:$0xf]
        %v314 = vld [vmem:[%s300 + $0x28] sm:$0xf]
        %v315 = vld [vmem:[%s300 + $0x2c] sm:$0xf]
        %v316 = vld [vmem:[%s300 + $0x30] sm:$0xf]
        %v317 = vld [vmem:[%s300 + $0x34] sm:$0xf]
        %v318 = vld [vmem:[%s300 + $0x38] sm:$0xf]
        %v319 = vld [vmem:[%s300 + $0x3c] sm:$0xf]
        %v320 = vld [vmem:[%s300 + $0x40] sm:$0xf]
        %v321 = vld [vmem:[%s300 + $0x44] sm:$0xf]
        %v322 = vld [vmem:[%s300 + $0x48] sm:$0xf]
        %v323 = vld [vmem:[%s300 + $0x4c] sm:$0xf]
        %v324 = vld [vmem:[%s300 + $0x50] sm:$0xf]
        %v325 = vld [vmem:[%s300 + $0x54] sm:$0xf]
        %v326 = vld [vmem:[%s300 + $0x58] sm:$0xf]
        %v327 = vld [vmem:[%s300 + $0x5c] sm:$0xf]
        %v328 = vld [vmem:[%s300 + $0x60] sm:$0xf]
        %v329 = vld [vmem:[%s300 + $0x64] sm:$0xf]
        %v330 = vld [vmem:[%s300 + $0x68] sm:$0xf]
        %v331 = vld [vmem:[%s300 + $0x6c] sm:$0xf]
        %v332 = vld [vmem:[%s300 + $0x70] sm:$0xf]
        %v333 = vld [vmem:[%s300 + $0x74] sm:$0xf]
        %v334 = vld [vmem:[%s300 + $0x78] sm:$0xf]
        %v335 = vld [vmem:[%s300 + $0x7c] sm:$0xf]
        %v336 = vld [vmem:[%s294] sm:$0xf]
        %v337 = vld [vmem:[%s294 + $0x4] sm:$0xf]
        %v338 = vld [vmem:[%s294 + $0x8] sm:$0xf]
        %v339 = vld [vmem:[%s294 + $0xc] sm:$0xf]
        %v340 = vld [vmem:[%s294 + $0x10] sm:$0xf]
        %v341 = vld [vmem:[%s294 + $0x14] sm:$0xf]
        %v342 = vld [vmem:[%s294 + $0x18] sm:$0xf]
        %v343 = vld [vmem:[%s294 + $0x1c] sm:$0xf]
        %v344 = vld [vmem:[%s294 + $0x20] sm:$0xf]
        %v345 = vld [vmem:[%s294 + $0x24] sm:$0xf]
        %v346 = vld [vmem:[%s294 + $0x28] sm:$0xf]
        %v347 = vld [vmem:[%s294 + $0x2c] sm:$0xf]
        %v348 = vld [vmem:[%s294 + $0x30] sm:$0xf]
        %v349 = vld [vmem:[%s294 + $0x34] sm:$0xf]
        %v350 = vld [vmem:[%s294 + $0x38] sm:$0xf]
        %v351 = vld [vmem:[%s294 + $0x3c] sm:$0xf]
        %v352 = vld [vmem:[%s294 + $0x40] sm:$0xf]
        %v353 = vld [vmem:[%s294 + $0x44] sm:$0xf]
        %v354 = vld [vmem:[%s294 + $0x48] sm:$0xf]
        %v355 = vld [vmem:[%s294 + $0x4c] sm:$0xf]
        %v356 = vld [vmem:[%s294 + $0x50] sm:$0xf]
        %v357 = vld [vmem:[%s294 + $0x54] sm:$0xf]
        %v358 = vld [vmem:[%s294 + $0x58] sm:$0xf]
        %v359 = vld [vmem:[%s294 + $0x5c] sm:$0xf]
        %v360 = vld [vmem:[%s294 + $0x60] sm:$0xf]
        %v361 = vld [vmem:[%s294 + $0x64] sm:$0xf]
        %v362 = vld [vmem:[%s294 + $0x68] sm:$0xf]
        %v363 = vld [vmem:[%s294 + $0x6c] sm:$0xf]
        %v364 = vld [vmem:[%s294 + $0x70] sm:$0xf]
        %v365 = vld [vmem:[%s294 + $0x74] sm:$0xf]
        %v366 = vld [vmem:[%s294 + $0x78] sm:$0xf]
        %v367 = vld [vmem:[%s294 + $0x7c] sm:$0xf]
        %v368 = vld [vmem:[%s2] sm:$0xf]
        %v369 = vld [vmem:[%s2 + $0x4] sm:$0xf]
        %v370 = vld [vmem:[%s2 + $0x8] sm:$0xf]
        %v371 = vld [vmem:[%s2 + $0xc] sm:$0xf]
        %v372 = vld [vmem:[%s3] sm:$0xf]
        %v373 = vld [vmem:[%s3 + $0x4] sm:$0xf]
        %v374 = vld [vmem:[%s3 + $0x8] sm:$0xf]
        %v375 = vld [vmem:[%s3 + $0xc] sm:$0xf]
        %v408 = vunpack.c.l.b16 %v304
        %v409 = vunpack.c.l.b16 %v305
        %v410 = vunpack.c.l.b16 %v306
        %v411 = vunpack.c.l.b16 %v307
        %v412 = vunpack.c.l.b16 %v308
        %v413 = vunpack.c.l.b16 %v309
        %v414 = vunpack.c.l.b16 %v310
        %v415 = vunpack.c.l.b16 %v311
        %v416 = vunpack.c.l.b16 %v312
        %v417 = vunpack.c.l.b16 %v313
        %v418 = vunpack.c.l.b16 %v314
        %v419 = vunpack.c.l.b16 %v315
        %v420 = vunpack.c.l.b16 %v316
        %v421 = vunpack.c.l.b16 %v317
        %v422 = vunpack.c.l.b16 %v318
        %v423 = vunpack.c.l.b16 %v319
        %v424 = vunpack.c.l.b16 %v320
        %v425 = vunpack.c.l.b16 %v321
        %v426 = vunpack.c.l.b16 %v322
        %v427 = vunpack.c.l.b16 %v323
        %v428 = vunpack.c.l.b16 %v324
        %v429 = vunpack.c.l.b16 %v325
        %v430 = vunpack.c.l.b16 %v326
        %v431 = vunpack.c.l.b16 %v327
        %v432 = vunpack.c.l.b16 %v328
        %v433 = vunpack.c.l.b16 %v329
        %v434 = vunpack.c.l.b16 %v330
        %v435 = vunpack.c.l.b16 %v331
        %v436 = vunpack.c.l.b16 %v332
        %v437 = vunpack.c.l.b16 %v333
        %v438 = vunpack.c.l.b16 %v334
        %v439 = vunpack.c.l.b16 %v335
        %v440 = vpack.c.b16 %v409, %v408
        %v441 = vpack.c.b16 %v411, %v410
        %v442 = vpack.c.b16 %v413, %v412
        %v443 = vpack.c.b16 %v415, %v414
        %v444 = vpack.c.b16 %v417, %v416
        %v445 = vpack.c.b16 %v419, %v418
        %v446 = vpack.c.b16 %v421, %v420
        %v447 = vpack.c.b16 %v423, %v422
        %v448 = vpack.c.b16 %v425, %v424
        %v449 = vpack.c.b16 %v427, %v426
        %v450 = vpack.c.b16 %v429, %v428
        %v451 = vpack.c.b16 %v431, %v430
        %v452 = vpack.c.b16 %v433, %v432
        %v453 = vpack.c.b16 %v435, %v434
        %v454 = vpack.c.b16 %v437, %v436
        %v455 = vpack.c.b16 %v439, %v438
        %v460 = vunpack.c.l.b16 %v372
        %v461 = vunpack.c.l.b16 %v373
        %v462 = vunpack.c.l.b16 %v374
        %v463 = vunpack.c.l.b16 %v375
        %v464 = vpack.c.b16 %v461, %v460
        %v465 = vpack.c.b16 %v463, %v462
        %vm468 = vcmask 261120
        %v470 = vsel %vm468, %v440, 0
        %v473 = vsel %vm468, %v441, 0
        %v476 = vsel %vm468, %v442, 0
        %v479 = vsel %vm468, %v443, 0
        %v482 = vsel %vm468, %v444, 0
        %v485 = vsel %vm468, %v445, 0
        %v488 = vsel %vm468, %v446, 0
        %v491 = vsel %vm468, %v447, 0
        %v494 = vsel %vm468, %v448, 0
        %v497 = vsel %vm468, %v449, 0
        %v500 = vsel %vm468, %v450, 0
        %v503 = vsel %vm468, %v451, 0
        %v506 = vsel %vm468, %v452, 0
        %v509 = vsel %vm468, %v453, 0
        %v512 = vsel %vm468, %v454, 0
        %v515 = vsel %vm468, %v455, 0
        %517 = vmatprep.subr.bf16.mxu0 0
        %518 = vmatpush1.bf16.msra.mxu0 0
        %519 = vmatprep.subr.bf16.mxu0 0
        %520 = vmatpush1.bf16.msra.mxu0 0
        %521 = vmatprep.subr.bf16.mxu0 0
        %522 = vmatpush1.bf16.msra.mxu0 0
        %523 = vmatprep.subr.bf16.mxu0 0
        %524 = vmatpush1.bf16.msra.mxu0 0
        %525 = vmatprep.subr.bf16.mxu0 0
        %526 = vmatpush1.bf16.msra.mxu0 0
        %527 = vmatprep.subr.bf16.mxu0 0
        %528 = vmatpush1.bf16.msra.mxu0 0
        %529 = vmatprep.subr.bf16.mxu0 0
        %530 = vmatpush1.bf16.msra.mxu0 %v465
        %531 = vmatprep.subr.bf16.mxu0 0
        %532 = vmatpush1.bf16.msra.mxu0 %v464
        %533 = vmatprep.subr.bf16.mxu0 0
        %534 = vmatpush2.bf16.msra.mxu0 0
        %535 = vmatprep.subr.bf16.mxu0 0
        %536 = vmatpush2.bf16.msra.mxu0 0
        %537 = vmatprep.subr.bf16.mxu0 0
        %538 = vmatpush2.bf16.msra.mxu0 0
        %539 = vmatprep.subr.bf16.mxu0 0
        %540 = vmatpush2.bf16.msra.mxu0 0
        %541 = vmatprep.subr.bf16.mxu0 0
        %542 = vmatpush2.bf16.msra.mxu0 0
        %543 = vmatprep.subr.bf16.mxu0 0
        %544 = vmatpush2.bf16.msra.mxu0 0
        %545 = vmatprep.subr.bf16.mxu0 0
        %546 = vmatpush2.bf16.msra.mxu0 0
        %547 = vmatprep.subr.bf16.mxu0 0
        %548 = vmatpush2.bf16.msra.mxu0 0
        %549 = vmatprep.mubr.bf16.mxu0 0
        %550 = vmatmul.mubr.bf16.gmra.mxu0 %v470
        %v551 = vpop.f32.mrf.mxu0
        %v552 = vadd.f32 0.0, %v551
        %v553 = vpop.f32.mrf.mxu0
        %v554 = vpop.f32.mrf.mxu0
        %v555 = vadd.f32 0.0, %v554
        %v556 = vpop.f32.mrf.mxu0
        %557 = vmatprep.mubr.bf16.mxu0 0
        %558 = vmatmul.mubr.bf16.gmra.mxu0 %v473
        %v559 = vpop.f32.mrf.mxu0
        %v560 = vadd.f32 0.0, %v559
        %v561 = vpop.f32.mrf.mxu0
        %v562 = vpop.f32.mrf.mxu0
        %v563 = vadd.f32 0.0, %v562
        %v564 = vpop.f32.mrf.mxu0
        %565 = vmatprep.mubr.bf16.mxu0 0
        %566 = vmatmul.mubr.bf16.gmra.mxu0 %v476
        %v567 = vpop.f32.mrf.mxu0
        %v568 = vadd.f32 0.0, %v567
        %v569 = vpop.f32.mrf.mxu0
        %v570 = vpop.f32.mrf.mxu0
        %v571 = vadd.f32 0.0, %v570
        %v572 = vpop.f32.mrf.mxu0
        %573 = vmatprep.mubr.bf16.mxu0 0
        %574 = vmatmul.mubr.bf16.gmra.mxu0 %v479
        %v575 = vpop.f32.mrf.mxu0
        %v576 = vadd.f32 0.0, %v575
        %v577 = vpop.f32.mrf.mxu0
        %v578 = vpop.f32.mrf.mxu0
        %v579 = vadd.f32 0.0, %v578
        %v580 = vpop.f32.mrf.mxu0
        %581 = vmatprep.mubr.bf16.mxu0 0
        %582 = vmatmul.mubr.bf16.gmra.mxu0 %v482
        %v583 = vpop.f32.mrf.mxu0
        %v584 = vadd.f32 0.0, %v583
        %v585 = vpop.f32.mrf.mxu0
        %v586 = vpop.f32.mrf.mxu0
        %v587 = vadd.f32 0.0, %v586
        %v588 = vpop.f32.mrf.mxu0
        %589 = vmatprep.mubr.bf16.mxu0 0
        %590 = vmatmul.mubr.bf16.gmra.mxu0 %v485
        %v591 = vpop.f32.mrf.mxu0
        %v592 = vadd.f32 0.0, %v591
        %v593 = vpop.f32.mrf.mxu0
        %v594 = vpop.f32.mrf.mxu0
        %v595 = vadd.f32 0.0, %v594
        %v596 = vpop.f32.mrf.mxu0
        %597 = vmatprep.mubr.bf16.mxu0 0
        %598 = vmatmul.mubr.bf16.gmra.mxu0 %v488
        %v599 = vpop.f32.mrf.mxu0
        %v600 = vadd.f32 0.0, %v599
        %v601 = vpop.f32.mrf.mxu0
        %v602 = vpop.f32.mrf.mxu0
        %v603 = vadd.f32 0.0, %v602
        %v604 = vpop.f32.mrf.mxu0
        %605 = vmatprep.mubr.bf16.mxu0 0
        %606 = vmatmul.mubr.bf16.gmra.mxu0 %v491
        %v607 = vpop.f32.mrf.mxu0
        %v608 = vadd.f32 0.0, %v607
        %v609 = vpop.f32.mrf.mxu0
        %v610 = vpop.f32.mrf.mxu0
        %v611 = vadd.f32 0.0, %v610
        %v612 = vpop.f32.mrf.mxu0
        %613 = vmatprep.mubr.bf16.mxu0 0
        %614 = vmatmul.mubr.bf16.gmra.mxu0 %v494
        %v615 = vpop.f32.mrf.mxu0
        %v616 = vadd.f32 0.0, %v615
        %v617 = vpop.f32.mrf.mxu0
        %v618 = vpop.f32.mrf.mxu0
        %v619 = vadd.f32 0.0, %v618
        %v620 = vpop.f32.mrf.mxu0
        %621 = vmatprep.mubr.bf16.mxu0 0
        %622 = vmatmul.mubr.bf16.gmra.mxu0 %v497
        %v623 = vpop.f32.mrf.mxu0
        %v624 = vadd.f32 0.0, %v623
        %v625 = vpop.f32.mrf.mxu0
        %v626 = vpop.f32.mrf.mxu0
        %v627 = vadd.f32 0.0, %v626
        %v628 = vpop.f32.mrf.mxu0
        %629 = vmatprep.mubr.bf16.mxu0 0
        %630 = vmatmul.mubr.bf16.gmra.mxu0 %v500
        %v631 = vpop.f32.mrf.mxu0
        %v632 = vadd.f32 0.0, %v631
        %v633 = vpop.f32.mrf.mxu0
        %v634 = vpop.f32.mrf.mxu0
        %v635 = vadd.f32 0.0, %v634
        %v636 = vpop.f32.mrf.mxu0
        %637 = vmatprep.mubr.bf16.mxu0 0
        %638 = vmatmul.mubr.bf16.gmra.mxu0 %v503
        %v639 = vpop.f32.mrf.mxu0
        %v640 = vadd.f32 0.0, %v639
        %v641 = vpop.f32.mrf.mxu0
        %v642 = vpop.f32.mrf.mxu0
        %v643 = vadd.f32 0.0, %v642
        %v644 = vpop.f32.mrf.mxu0
        %645 = vmatprep.mubr.bf16.mxu0 0
        %646 = vmatmul.mubr.bf16.gmra.mxu0 %v506
        %v647 = vpop.f32.mrf.mxu0
        %v648 = vadd.f32 0.0, %v647
        %v649 = vpop.f32.mrf.mxu0
        %v650 = vpop.f32.mrf.mxu0
        %v651 = vadd.f32 0.0, %v650
        %v652 = vpop.f32.mrf.mxu0
        %653 = vmatprep.mubr.bf16.mxu0 0
        %654 = vmatmul.mubr.bf16.gmra.mxu0 %v509
        %v655 = vpop.f32.mrf.mxu0
        %v656 = vadd.f32 0.0, %v655
        %v657 = vpop.f32.mrf.mxu0
        %v658 = vpop.f32.mrf.mxu0
        %v659 = vadd.f32 0.0, %v658
        %v660 = vpop.f32.mrf.mxu0
        %661 = vmatprep.mubr.bf16.mxu0 0
        %662 = vmatmul.mubr.bf16.gmra.mxu0 %v512
        %v663 = vpop.f32.mrf.mxu0
        %v664 = vadd.f32 0.0, %v663
        %v665 = vpop.f32.mrf.mxu0
        %v666 = vpop.f32.mrf.mxu0
        %v667 = vadd.f32 0.0, %v666
        %v668 = vpop.f32.mrf.mxu0
        %669 = vmatprep.mubr.bf16.mxu0 0
        %670 = vmatmul.mubr.bf16.gmra.mxu0 %v515
        %v671 = vpop.f32.mrf.mxu0
        %v672 = vadd.f32 0.0, %v671
        %v673 = vpop.f32.mrf.mxu0
        %v674 = vpop.f32.mrf.mxu0
        %v675 = vadd.f32 0.0, %v674
        %v676 = vpop.f32.mrf.mxu0
        %677 = vdwg.mxu0
        %v710 = vunpack.c.l.b16 %v336
        %v711 = vunpack.c.l.b16 %v337
        %v712 = vunpack.c.l.b16 %v338
        %v713 = vunpack.c.l.b16 %v339
        %v714 = vunpack.c.l.b16 %v340
        %v715 = vunpack.c.l.b16 %v341
        %v716 = vunpack.c.l.b16 %v342
        %v717 = vunpack.c.l.b16 %v343
        %v718 = vunpack.c.l.b16 %v344
        %v719 = vunpack.c.l.b16 %v345
        %v720 = vunpack.c.l.b16 %v346
        %v721 = vunpack.c.l.b16 %v347
        %v722 = vunpack.c.l.b16 %v348
        %v723 = vunpack.c.l.b16 %v349
        %v724 = vunpack.c.l.b16 %v350
        %v725 = vunpack.c.l.b16 %v351
        %v726 = vunpack.c.l.b16 %v352
        %v727 = vunpack.c.l.b16 %v353
        %v728 = vunpack.c.l.b16 %v354
        %v729 = vunpack.c.l.b16 %v355
        %v730 = vunpack.c.l.b16 %v356
        %v731 = vunpack.c.l.b16 %v357
        %v732 = vunpack.c.l.b16 %v358
        %v733 = vunpack.c.l.b16 %v359
        %v734 = vunpack.c.l.b16 %v360
        %v735 = vunpack.c.l.b16 %v361
        %v736 = vunpack.c.l.b16 %v362
        %v737 = vunpack.c.l.b16 %v363
        %v738 = vunpack.c.l.b16 %v364
        %v739 = vunpack.c.l.b16 %v365
        %v740 = vunpack.c.l.b16 %v366
        %v741 = vunpack.c.l.b16 %v367
        %v742 = vpack.c.b16 %v711, %v710
        %v743 = vpack.c.b16 %v713, %v712
        %v744 = vpack.c.b16 %v715, %v714
        %v745 = vpack.c.b16 %v717, %v716
        %v746 = vpack.c.b16 %v719, %v718
        %v747 = vpack.c.b16 %v721, %v720
        %v748 = vpack.c.b16 %v723, %v722
        %v749 = vpack.c.b16 %v725, %v724
        %v750 = vpack.c.b16 %v727, %v726
        %v751 = vpack.c.b16 %v729, %v728
        %v752 = vpack.c.b16 %v731, %v730
        %v753 = vpack.c.b16 %v733, %v732
        %v754 = vpack.c.b16 %v735, %v734
        %v755 = vpack.c.b16 %v737, %v736
        %v756 = vpack.c.b16 %v739, %v738
        %v757 = vpack.c.b16 %v741, %v740
        %v762 = vunpack.c.l.b16 %v368
        %v763 = vunpack.c.l.b16 %v369
        %v764 = vunpack.c.l.b16 %v370
        %v765 = vunpack.c.l.b16 %v371
        %v766 = vpack.c.b16 %v763, %v762
        %v767 = vpack.c.b16 %v765, %v764
        %v771 = vsel %vm468, %v742, 0
        %v774 = vsel %vm468, %v743, 0
        %v777 = vsel %vm468, %v744, 0
        %v780 = vsel %vm468, %v745, 0
        %v783 = vsel %vm468, %v746, 0
        %v786 = vsel %vm468, %v747, 0
        %v789 = vsel %vm468, %v748, 0
        %v792 = vsel %vm468, %v749, 0
        %v795 = vsel %vm468, %v750, 0
        %v798 = vsel %vm468, %v751, 0
        %v801 = vsel %vm468, %v752, 0
        %v804 = vsel %vm468, %v753, 0
        %v807 = vsel %vm468, %v754, 0
        %v810 = vsel %vm468, %v755, 0
        %v813 = vsel %vm468, %v756, 0
        %v816 = vsel %vm468, %v757, 0
        %818 = vmatprep.subr.bf16.mxu0 0
        %819 = vmatpush1.bf16.msra.mxu0 0
        %820 = vmatprep.subr.bf16.mxu0 0
        %821 = vmatpush1.bf16.msra.mxu0 0
        %822 = vmatprep.subr.bf16.mxu0 0
        %823 = vmatpush1.bf16.msra.mxu0 0
        %824 = vmatprep.subr.bf16.mxu0 0
        %825 = vmatpush1.bf16.msra.mxu0 0
        %826 = vmatprep.subr.bf16.mxu0 0
        %827 = vmatpush1.bf16.msra.mxu0 0
        %828 = vmatprep.subr.bf16.mxu0 0
        %829 = vmatpush1.bf16.msra.mxu0 0
        %830 = vmatprep.subr.bf16.mxu0 0
        %831 = vmatpush1.bf16.msra.mxu0 %v767
        %832 = vmatprep.subr.bf16.mxu0 0
        %833 = vmatpush1.bf16.msra.mxu0 %v766
        %834 = vmatprep.subr.bf16.mxu0 0
        %835 = vmatpush2.bf16.msra.mxu0 0
        %836 = vmatprep.subr.bf16.mxu0 0
        %837 = vmatpush2.bf16.msra.mxu0 0
        %838 = vmatprep.subr.bf16.mxu0 0
        %839 = vmatpush2.bf16.msra.mxu0 0
        %840 = vmatprep.subr.bf16.mxu0 0
        %841 = vmatpush2.bf16.msra.mxu0 0
        %842 = vmatprep.subr.bf16.mxu0 0
        %843 = vmatpush2.bf16.msra.mxu0 0
        %844 = vmatprep.subr.bf16.mxu0 0
        %845 = vmatpush2.bf16.msra.mxu0 0
        %846 = vmatprep.subr.bf16.mxu0 0
        %847 = vmatpush2.bf16.msra.mxu0 0
        %848 = vmatprep.subr.bf16.mxu0 0
        %849 = vmatpush2.bf16.msra.mxu0 0
        %850 = vmatprep.mubr.bf16.mxu0 0
        %851 = vmatmul.mubr.bf16.gmra.mxu0 %v771
        %v852 = vpop.f32.mrf.mxu0
        %v853 = vadd.f32 %v552, %v852
        %v854 = vpop.f32.mrf.mxu0
        %v855 = vpop.f32.mrf.mxu0
        %v856 = vadd.f32 %v555, %v855
        %v857 = vpop.f32.mrf.mxu0
        %858 = vmatprep.mubr.bf16.mxu0 0
        %859 = vmatmul.mubr.bf16.gmra.mxu0 %v774
        %v860 = vpop.f32.mrf.mxu0
        %v861 = vadd.f32 %v560, %v860
        %v862 = vpop.f32.mrf.mxu0
        %v863 = vpop.f32.mrf.mxu0
        %v864 = vadd.f32 %v563, %v863
        %v865 = vpop.f32.mrf.mxu0
        %866 = vmatprep.mubr.bf16.mxu0 0
        %867 = vmatmul.mubr.bf16.gmra.mxu0 %v777
        %v868 = vpop.f32.mrf.mxu0
        %v869 = vadd.f32 %v568, %v868
        %v870 = vpop.f32.mrf.mxu0
        %v871 = vpop.f32.mrf.mxu0
        %v872 = vadd.f32 %v571, %v871
        %v873 = vpop.f32.mrf.mxu0
        %874 = vmatprep.mubr.bf16.mxu0 0
        %875 = vmatmul.mubr.bf16.gmra.mxu0 %v780
        %v876 = vpop.f32.mrf.mxu0
        %v877 = vadd.f32 %v576, %v876
        %v878 = vpop.f32.mrf.mxu0
        %v879 = vpop.f32.mrf.mxu0
        %v880 = vadd.f32 %v579, %v879
        %v881 = vpop.f32.mrf.mxu0
        %882 = vmatprep.mubr.bf16.mxu0 0
        %883 = vmatmul.mubr.bf16.gmra.mxu0 %v783
        %v884 = vpop.f32.mrf.mxu0
        %v885 = vadd.f32 %v584, %v884
        %v886 = vpop.f32.mrf.mxu0
        %v887 = vpop.f32.mrf.mxu0
        %v888 = vadd.f32 %v587, %v887
        %v889 = vpop.f32.mrf.mxu0
        %890 = vmatprep.mubr.bf16.mxu0 0
        %891 = vmatmul.mubr.bf16.gmra.mxu0 %v786
        %v892 = vpop.f32.mrf.mxu0
        %v893 = vadd.f32 %v592, %v892
        %v894 = vpop.f32.mrf.mxu0
        %v895 = vpop.f32.mrf.mxu0
        %v896 = vadd.f32 %v595, %v895
        %v897 = vpop.f32.mrf.mxu0
        %898 = vmatprep.mubr.bf16.mxu0 0
        %899 = vmatmul.mubr.bf16.gmra.mxu0 %v789
        %v900 = vpop.f32.mrf.mxu0
        %v901 = vadd.f32 %v600, %v900
        %v902 = vpop.f32.mrf.mxu0
        %v903 = vpop.f32.mrf.mxu0
        %v904 = vadd.f32 %v603, %v903
        %v905 = vpop.f32.mrf.mxu0
        %906 = vmatprep.mubr.bf16.mxu0 0
        %907 = vmatmul.mubr.bf16.gmra.mxu0 %v792
        %v908 = vpop.f32.mrf.mxu0
        %v909 = vadd.f32 %v608, %v908
        %v910 = vpop.f32.mrf.mxu0
        %v911 = vpop.f32.mrf.mxu0
        %v912 = vadd.f32 %v611, %v911
        %v913 = vpop.f32.mrf.mxu0
        %914 = vmatprep.mubr.bf16.mxu0 0
        %915 = vmatmul.mubr.bf16.gmra.mxu0 %v795
        %v916 = vpop.f32.mrf.mxu0
        %v917 = vadd.f32 %v616, %v916
        %v918 = vpop.f32.mrf.mxu0
        %v919 = vpop.f32.mrf.mxu0
        %v920 = vadd.f32 %v619, %v919
        %v921 = vpop.f32.mrf.mxu0
        %922 = vmatprep.mubr.bf16.mxu0 0
        %923 = vmatmul.mubr.bf16.gmra.mxu0 %v798
        %v924 = vpop.f32.mrf.mxu0
        %v925 = vadd.f32 %v624, %v924
        %v926 = vpop.f32.mrf.mxu0
        %v927 = vpop.f32.mrf.mxu0
        %v928 = vadd.f32 %v627, %v927
        %v929 = vpop.f32.mrf.mxu0
        %930 = vmatprep.mubr.bf16.mxu0 0
        %931 = vmatmul.mubr.bf16.gmra.mxu0 %v801
        %v932 = vpop.f32.mrf.mxu0
        %v933 = vadd.f32 %v632, %v932
        %v934 = vpop.f32.mrf.mxu0
        %v935 = vpop.f32.mrf.mxu0
        %v936 = vadd.f32 %v635, %v935
        %v937 = vpop.f32.mrf.mxu0
        %938 = vmatprep.mubr.bf16.mxu0 0
        %939 = vmatmul.mubr.bf16.gmra.mxu0 %v804
        %v940 = vpop.f32.mrf.mxu0
        %v941 = vadd.f32 %v640, %v940
        %v942 = vpop.f32.mrf.mxu0
        %v943 = vpop.f32.mrf.mxu0
        %v944 = vadd.f32 %v643, %v943
        %v945 = vpop.f32.mrf.mxu0
        %946 = vmatprep.mubr.bf16.mxu0 0
        %947 = vmatmul.mubr.bf16.gmra.mxu0 %v807
        %v948 = vpop.f32.mrf.mxu0
        %v949 = vadd.f32 %v648, %v948
        %v950 = vpop.f32.mrf.mxu0
        %v951 = vpop.f32.mrf.mxu0
        %v952 = vadd.f32 %v651, %v951
        %v953 = vpop.f32.mrf.mxu0
        %954 = vmatprep.mubr.bf16.mxu0 0
        %955 = vmatmul.mubr.bf16.gmra.mxu0 %v810
        %v956 = vpop.f32.mrf.mxu0
        %v957 = vadd.f32 %v656, %v956
        %v958 = vpop.f32.mrf.mxu0
        %v959 = vpop.f32.mrf.mxu0
        %v960 = vadd.f32 %v659, %v959
        %v961 = vpop.f32.mrf.mxu0
        %962 = vmatprep.mubr.bf16.mxu0 0
        %963 = vmatmul.mubr.bf16.gmra.mxu0 %v813
        %v964 = vpop.f32.mrf.mxu0
        %v965 = vadd.f32 %v664, %v964
        %v966 = vpop.f32.mrf.mxu0
        %v967 = vpop.f32.mrf.mxu0
        %v968 = vadd.f32 %v667, %v967
        %v969 = vpop.f32.mrf.mxu0
        %970 = vmatprep.mubr.bf16.mxu0 0
        %971 = vmatmul.mubr.bf16.gmra.mxu0 %v816
        %v972 = vpop.f32.mrf.mxu0
        %v973 = vadd.f32 %v672, %v972
        %v974 = vpop.f32.mrf.mxu0
        %v975 = vpop.f32.mrf.mxu0
        %v976 = vadd.f32 %v675, %v975
        %v977 = vpop.f32.mrf.mxu0
        %978 = vdwg.mxu0
        %v979 = vld [vmem:[%s4] sm:$0x1]
        %v981 = vlaneseq
        %v982 = vshrl.u32 %v981, 7
        %v983 = vsub.s32 0, %v982
        %v984 = vrot.slane %v979, %v983
        %v986 = vadd.f32 %v853, %v984
        %v987 = vadd.f32 %v856, %v984
        %v988 = vadd.f32 %v861, %v984
        %v989 = vadd.f32 %v864, %v984
        %v990 = vadd.f32 %v869, %v984
        %v991 = vadd.f32 %v872, %v984
        %v992 = vadd.f32 %v877, %v984
        %v993 = vadd.f32 %v880, %v984
        %v994 = vadd.f32 %v885, %v984
        %v995 = vadd.f32 %v888, %v984
        %v996 = vadd.f32 %v893, %v984
        %v997 = vadd.f32 %v896, %v984
        %v998 = vadd.f32 %v901, %v984
        %v999 = vadd.f32 %v904, %v984
        %v1000 = vadd.f32 %v909, %v984
        %v1001 = vadd.f32 %v912, %v984
        %v1002 = vadd.f32 %v917, %v984
        %v1003 = vadd.f32 %v920, %v984
        %v1004 = vadd.f32 %v925, %v984
        %v1005 = vadd.f32 %v928, %v984
        %v1006 = vadd.f32 %v933, %v984
        %v1007 = vadd.f32 %v936, %v984
        %v1008 = vadd.f32 %v941, %v984
        %v1009 = vadd.f32 %v944, %v984
        %v1010 = vadd.f32 %v949, %v984
        %v1011 = vadd.f32 %v952, %v984
        %v1012 = vadd.f32 %v957, %v984
        %v1013 = vadd.f32 %v960, %v984
        %v1014 = vadd.f32 %v965, %v984
        %v1015 = vadd.f32 %v968, %v984
        %v1016 = vadd.f32 %v973, %v984
        %v1017 = vadd.f32 %v976, %v984
        %v1018 = vmax.f32 %v986, 0.0
        %v1019 = vmax.f32 %v987, 0.0
        %v1020 = vmax.f32 %v988, 0.0
        %v1021 = vmax.f32 %v989, 0.0
        %v1022 = vmax.f32 %v990, 0.0
        %v1023 = vmax.f32 %v991, 0.0
        %v1024 = vmax.f32 %v992, 0.0
        %v1025 = vmax.f32 %v993, 0.0
        %v1026 = vmax.f32 %v994, 0.0
        %v1027 = vmax.f32 %v995, 0.0
        %v1028 = vmax.f32 %v996, 0.0
        %v1029 = vmax.f32 %v997, 0.0
        %v1030 = vmax.f32 %v998, 0.0
        %v1031 = vmax.f32 %v999, 0.0
        %v1032 = vmax.f32 %v1000, 0.0
        %v1033 = vmax.f32 %v1001, 0.0
        %v1034 = vmax.f32 %v1002, 0.0
        %v1035 = vmax.f32 %v1003, 0.0
        %v1036 = vmax.f32 %v1004, 0.0
        %v1037 = vmax.f32 %v1005, 0.0
        %v1038 = vmax.f32 %v1006, 0.0
        %v1039 = vmax.f32 %v1007, 0.0
        %v1040 = vmax.f32 %v1008, 0.0
        %v1041 = vmax.f32 %v1009, 0.0
        %v1042 = vmax.f32 %v1010, 0.0
        %v1043 = vmax.f32 %v1011, 0.0
        %v1044 = vmax.f32 %v1012, 0.0
        %v1045 = vmax.f32 %v1013, 0.0
        %v1046 = vmax.f32 %v1014, 0.0
        %v1047 = vmax.f32 %v1015, 0.0
        %v1048 = vmax.f32 %v1016, 0.0
        %v1049 = vmax.f32 %v1017, 0.0
        %v1050 = vld [vmem:[%s5] sm:$0x1]
        %v1052 = vlaneseq
        %v1053 = vshrl.u32 %v1052, 7
        %v1054 = vsub.s32 0, %v1053
        %v1055 = vrot.slane %v1050, %v1054
        %v1057 = vmul.f32 %v1018, %v1055
        %v1058 = vmul.f32 %v1019, %v1055
        %v1059 = vmul.f32 %v1020, %v1055
        %v1060 = vmul.f32 %v1021, %v1055
        %v1061 = vmul.f32 %v1022, %v1055
        %v1062 = vmul.f32 %v1023, %v1055
        %v1063 = vmul.f32 %v1024, %v1055
        %v1064 = vmul.f32 %v1025, %v1055
        %v1065 = vmul.f32 %v1026, %v1055
        %v1066 = vmul.f32 %v1027, %v1055
        %v1067 = vmul.f32 %v1028, %v1055
        %v1068 = vmul.f32 %v1029, %v1055
        %v1069 = vmul.f32 %v1030, %v1055
        %v1070 = vmul.f32 %v1031, %v1055
        %v1071 = vmul.f32 %v1032, %v1055
        %v1072 = vmul.f32 %v1033, %v1055
        %v1073 = vmul.f32 %v1034, %v1055
        %v1074 = vmul.f32 %v1035, %v1055
        %v1075 = vmul.f32 %v1036, %v1055
        %v1076 = vmul.f32 %v1037, %v1055
        %v1077 = vmul.f32 %v1038, %v1055
        %v1078 = vmul.f32 %v1039, %v1055
        %v1079 = vmul.f32 %v1040, %v1055
        %v1080 = vmul.f32 %v1041, %v1055
        %v1081 = vmul.f32 %v1042, %v1055
        %v1082 = vmul.f32 %v1043, %v1055
        %v1083 = vmul.f32 %v1044, %v1055
        %v1084 = vmul.f32 %v1045, %v1055
        %v1085 = vmul.f32 %v1046, %v1055
        %v1086 = vmul.f32 %v1047, %v1055
        %v1087 = vmul.f32 %v1048, %v1055
        %v1088 = vmul.f32 %v1049, %v1055
        %1089 = vadd.xlane.f32.xlu0 %v1057
        %v1090 = vpop.xlane.xlu0 %1089
        %1091 = vadd.xlane.f32.xlu0 %v1058
        %v1092 = vpop.xlane.xlu0 %1091
        %1093 = vadd.xlane.f32.xlu0 %v1059
        %v1094 = vpop.xlane.xlu0 %1093
        %1095 = vadd.xlane.f32.xlu0 %v1060
        %v1096 = vpop.xlane.xlu0 %1095
        %1097 = vadd.xlane.f32.xlu0 %v1061
        %v1098 = vpop.xlane.xlu0 %1097
        %1099 = vadd.xlane.f32.xlu0 %v1062
        %v1100 = vpop.xlane.xlu0 %1099
        %1101 = vadd.xlane.f32.xlu0 %v1063
        %v1102 = vpop.xlane.xlu0 %1101
        %1103 = vadd.xlane.f32.xlu0 %v1064
        %v1104 = vpop.xlane.xlu0 %1103
        %1105 = vadd.xlane.f32.xlu0 %v1065
        %v1106 = vpop.xlane.xlu0 %1105
        %1107 = vadd.xlane.f32.xlu0 %v1066
        %v1108 = vpop.xlane.xlu0 %1107
        %1109 = vadd.xlane.f32.xlu0 %v1067
        %v1110 = vpop.xlane.xlu0 %1109
        %1111 = vadd.xlane.f32.xlu0 %v1068
        %v1112 = vpop.xlane.xlu0 %1111
        %1113 = vadd.xlane.f32.xlu0 %v1069
        %v1114 = vpop.xlane.xlu0 %1113
        %1115 = vadd.xlane.f32.xlu0 %v1070
        %v1116 = vpop.xlane.xlu0 %1115
        %1117 = vadd.xlane.f32.xlu0 %v1071
        %v1118 = vpop.xlane.xlu0 %1117
        %1119 = vadd.xlane.f32.xlu0 %v1072
        %v1120 = vpop.xlane.xlu0 %1119
        %1121 = vadd.xlane.f32.xlu0 %v1073
        %v1122 = vpop.xlane.xlu0 %1121
        %1123 = vadd.xlane.f32.xlu0 %v1074
        %v1124 = vpop.xlane.xlu0 %1123
        %1125 = vadd.xlane.f32.xlu0 %v1075
        %v1126 = vpop.xlane.xlu0 %1125
        %1127 = vadd.xlane.f32.xlu0 %v1076
        %v1128 = vpop.xlane.xlu0 %1127
        %1129 = vadd.xlane.f32.xlu0 %v1077
        %v1130 = vpop.xlane.xlu0 %1129
        %1131 = vadd.xlane.f32.xlu0 %v1078
        %v1132 = vpop.xlane.xlu0 %1131
        %1133 = vadd.xlane.f32.xlu0 %v1079
        %v1134 = vpop.xlane.xlu0 %1133
        %1135 = vadd.xlane.f32.xlu0 %v1080
        %v1136 = vpop.xlane.xlu0 %1135
        %1137 = vadd.xlane.f32.xlu0 %v1081
        %v1138 = vpop.xlane.xlu0 %1137
        %1139 = vadd.xlane.f32.xlu0 %v1082
        %v1140 = vpop.xlane.xlu0 %1139
        %1141 = vadd.xlane.f32.xlu0 %v1083
        %v1142 = vpop.xlane.xlu0 %1141
        %1143 = vadd.xlane.f32.xlu0 %v1084
        %v1144 = vpop.xlane.xlu0 %1143
        %1145 = vadd.xlane.f32.xlu0 %v1085
        %v1146 = vpop.xlane.xlu0 %1145
        %1147 = vadd.xlane.f32.xlu0 %v1086
        %v1148 = vpop.xlane.xlu0 %1147
        %1149 = vadd.xlane.f32.xlu0 %v1087
        %v1150 = vpop.xlane.xlu0 %1149
        %1151 = vadd.xlane.f32.xlu0 %v1088
        %v1152 = vpop.xlane.xlu0 %1151
        %s1153 = sld [smem:[#allocation2]]
        %v1154 = vstv %s1153
        %v1155 = vadd.f32 %v1090, %v1154
        %v1156 = vadd.f32 %v1092, %v1154
        %v1157 = vadd.f32 %v1094, %v1154
        %v1158 = vadd.f32 %v1096, %v1154
        %v1159 = vadd.f32 %v1098, %v1154
        %v1160 = vadd.f32 %v1100, %v1154
        %v1161 = vadd.f32 %v1102, %v1154
        %v1162 = vadd.f32 %v1104, %v1154
        %v1163 = vadd.f32 %v1106, %v1154
        %v1164 = vadd.f32 %v1108, %v1154
        %v1165 = vadd.f32 %v1110, %v1154
        %v1166 = vadd.f32 %v1112, %v1154
        %v1167 = vadd.f32 %v1114, %v1154
        %v1168 = vadd.f32 %v1116, %v1154
        %v1169 = vadd.f32 %v1118, %v1154
        %v1170 = vadd.f32 %v1120, %v1154
        %v1171 = vadd.f32 %v1122, %v1154
        %v1172 = vadd.f32 %v1124, %v1154
        %v1173 = vadd.f32 %v1126, %v1154
        %v1174 = vadd.f32 %v1128, %v1154
        %v1175 = vadd.f32 %v1130, %v1154
        %v1176 = vadd.f32 %v1132, %v1154
        %v1177 = vadd.f32 %v1134, %v1154
        %v1178 = vadd.f32 %v1136, %v1154
        %v1179 = vadd.f32 %v1138, %v1154
        %v1180 = vadd.f32 %v1140, %v1154
        %v1181 = vadd.f32 %v1142, %v1154
        %v1182 = vadd.f32 %v1144, %v1154
        %v1183 = vadd.f32 %v1146, %v1154
        %v1184 = vadd.f32 %v1148, %v1154
        %v1185 = vadd.f32 %v1150, %v1154
        %v1186 = vadd.f32 %v1152, %v1154
        %v1187 = vxor.u32 %v1155, 2147483648
        %v1188 = vxor.u32 %v1156, 2147483648
        %v1189 = vxor.u32 %v1157, 2147483648
        %v1190 = vxor.u32 %v1158, 2147483648
        %v1191 = vxor.u32 %v1159, 2147483648
        %v1192 = vxor.u32 %v1160, 2147483648
        %v1193 = vxor.u32 %v1161, 2147483648
        %v1194 = vxor.u32 %v1162, 2147483648
        %v1195 = vxor.u32 %v1163, 2147483648
        %v1196 = vxor.u32 %v1164, 2147483648
        %v1197 = vxor.u32 %v1165, 2147483648
        %v1198 = vxor.u32 %v1166, 2147483648
        %v1199 = vxor.u32 %v1167, 2147483648
        %v1200 = vxor.u32 %v1168, 2147483648
        %v1201 = vxor.u32 %v1169, 2147483648
        %v1202 = vxor.u32 %v1170, 2147483648
        %v1203 = vxor.u32 %v1171, 2147483648
        %v1204 = vxor.u32 %v1172, 2147483648
        %v1205 = vxor.u32 %v1173, 2147483648
        %v1206 = vxor.u32 %v1174, 2147483648
        %v1207 = vxor.u32 %v1175, 2147483648
        %v1208 = vxor.u32 %v1176, 2147483648
        %v1209 = vxor.u32 %v1177, 2147483648
        %v1210 = vxor.u32 %v1178, 2147483648
        %v1211 = vxor.u32 %v1179, 2147483648
        %v1212 = vxor.u32 %v1180, 2147483648
        %v1213 = vxor.u32 %v1181, 2147483648
        %v1214 = vxor.u32 %v1182, 2147483648
        %v1215 = vxor.u32 %v1183, 2147483648
        %v1216 = vxor.u32 %v1184, 2147483648
        %v1217 = vxor.u32 %v1185, 2147483648
        %v1218 = vxor.u32 %v1186, 2147483648
        %v1219 = vmul.f32 %v1187, 1.442695
        %v1220 = vpow.pop %v1219
        %v1221 = vmul.f32 %v1188, 1.442695
        %v1222 = vpow.pop %v1221
        %v1223 = vmul.f32 %v1189, 1.442695
        %v1224 = vpow.pop %v1223
        %v1225 = vmul.f32 %v1190, 1.442695
        %v1226 = vpow.pop %v1225
        %v1227 = vmul.f32 %v1191, 1.442695
        %v1228 = vpow.pop %v1227
        %v1229 = vmul.f32 %v1192, 1.442695
        %v1230 = vpow.pop %v1229
        %v1231 = vmul.f32 %v1193, 1.442695
        %v1232 = vpow.pop %v1231
        %v1233 = vmul.f32 %v1194, 1.442695
        %v1234 = vpow.pop %v1233
        %v1235 = vmul.f32 %v1195, 1.442695
        %v1236 = vpow.pop %v1235
        %v1237 = vmul.f32 %v1196, 1.442695
        %v1238 = vpow.pop %v1237
        %v1239 = vmul.f32 %v1197, 1.442695
        %v1240 = vpow.pop %v1239
        %v1241 = vmul.f32 %v1198, 1.442695
        %v1242 = vpow.pop %v1241
        %v1243 = vmul.f32 %v1199, 1.442695
        %v1244 = vpow.pop %v1243
        %v1245 = vmul.f32 %v1200, 1.442695
        %v1246 = vpow.pop %v1245
        %v1247 = vmul.f32 %v1201, 1.442695
        %v1248 = vpow.pop %v1247
        %v1249 = vmul.f32 %v1202, 1.442695
        %v1250 = vpow.pop %v1249
        %v1251 = vmul.f32 %v1203, 1.442695
        %v1252 = vpow.pop %v1251
        %v1253 = vmul.f32 %v1204, 1.442695
        %v1254 = vpow.pop %v1253
        %v1255 = vmul.f32 %v1205, 1.442695
        %v1256 = vpow.pop %v1255
        %v1257 = vmul.f32 %v1206, 1.442695
        %v1258 = vpow.pop %v1257
        %v1259 = vmul.f32 %v1207, 1.442695
        %v1260 = vpow.pop %v1259
        %v1261 = vmul.f32 %v1208, 1.442695
        %v1262 = vpow.pop %v1261
        %v1263 = vmul.f32 %v1209, 1.442695
        %v1264 = vpow.pop %v1263
        %v1265 = vmul.f32 %v1210, 1.442695
        %v1266 = vpow.pop %v1265
        %v1267 = vmul.f32 %v1211, 1.442695
        %v1268 = vpow.pop %v1267
        %v1269 = vmul.f32 %v1212, 1.442695
        %v1270 = vpow.pop %v1269
        %v1271 = vmul.f32 %v1213, 1.442695
        %v1272 = vpow.pop %v1271
        %v1273 = vmul.f32 %v1214, 1.442695
        %v1274 = vpow.pop %v1273
        %v1275 = vmul.f32 %v1215, 1.442695
        %v1276 = vpow.pop %v1275
        %v1277 = vmul.f32 %v1216, 1.442695
        %v1278 = vpow.pop %v1277
        %v1279 = vmul.f32 %v1217, 1.442695
        %v1280 = vpow.pop %v1279
        %v1281 = vmul.f32 %v1218, 1.442695
        %v1282 = vpow.pop %v1281
        %v1283 = vadd.f32 %v1220, 1.0
        %v1284 = vadd.f32 %v1222, 1.0
        %v1285 = vadd.f32 %v1224, 1.0
        %v1286 = vadd.f32 %v1226, 1.0
        %v1287 = vadd.f32 %v1228, 1.0
        %v1288 = vadd.f32 %v1230, 1.0
        %v1289 = vadd.f32 %v1232, 1.0
        %v1290 = vadd.f32 %v1234, 1.0
        %v1291 = vadd.f32 %v1236, 1.0
        %v1292 = vadd.f32 %v1238, 1.0
        %v1293 = vadd.f32 %v1240, 1.0
        %v1294 = vadd.f32 %v1242, 1.0
        %v1295 = vadd.f32 %v1244, 1.0
        %v1296 = vadd.f32 %v1246, 1.0
        %v1297 = vadd.f32 %v1248, 1.0
        %v1298 = vadd.f32 %v1250, 1.0
        %v1299 = vadd.f32 %v1252, 1.0
        %v1300 = vadd.f32 %v1254, 1.0
        %v1301 = vadd.f32 %v1256, 1.0
        %v1302 = vadd.f32 %v1258, 1.0
        %v1303 = vadd.f32 %v1260, 1.0
        %v1304 = vadd.f32 %v1262, 1.0
        %v1305 = vadd.f32 %v1264, 1.0
        %v1306 = vadd.f32 %v1266, 1.0
        %v1307 = vadd.f32 %v1268, 1.0
        %v1308 = vadd.f32 %v1270, 1.0
        %v1309 = vadd.f32 %v1272, 1.0
        %v1310 = vadd.f32 %v1274, 1.0
        %v1311 = vadd.f32 %v1276, 1.0
        %v1312 = vadd.f32 %v1278, 1.0
        %v1313 = vadd.f32 %v1280, 1.0
        %v1314 = vadd.f32 %v1282, 1.0
        %v1315 = vrcp.pop %v1283
        %v1316 = vmul.f32 1.0, %v1315
        %v1317 = vrcp.pop %v1284
        %v1318 = vmul.f32 1.0, %v1317
        %v1319 = vrcp.pop %v1285
        %v1320 = vmul.f32 1.0, %v1319
        %v1321 = vrcp.pop %v1286
        %v1322 = vmul.f32 1.0, %v1321
        %v1323 = vrcp.pop %v1287
        %v1324 = vmul.f32 1.0, %v1323
        %v1325 = vrcp.pop %v1288
        %v1326 = vmul.f32 1.0, %v1325
        %v1327 = vrcp.pop %v1289
        %v1328 = vmul.f32 1.0, %v1327
        %v1329 = vrcp.pop %v1290
        %v1330 = vmul.f32 1.0, %v1329
        %v1331 = vrcp.pop %v1291
        %v1332 = vmul.f32 1.0, %v1331
        %v1333 = vrcp.pop %v1292
        %v1334 = vmul.f32 1.0, %v1333
        %v1335 = vrcp.pop %v1293
        %v1336 = vmul.f32 1.0, %v1335
        %v1337 = vrcp.pop %v1294
        %v1338 = vmul.f32 1.0, %v1337
        %v1339 = vrcp.pop %v1295
        %v1340 = vmul.f32 1.0, %v1339
        %v1341 = vrcp.pop %v1296
        %v1342 = vmul.f32 1.0, %v1341
        %v1343 = vrcp.pop %v1297
        %v1344 = vmul.f32 1.0, %v1343
        %v1345 = vrcp.pop %v1298
        %v1346 = vmul.f32 1.0, %v1345
        %v1347 = vrcp.pop %v1299
        %v1348 = vmul.f32 1.0, %v1347
        %v1349 = vrcp.pop %v1300
        %v1350 = vmul.f32 1.0, %v1349
        %v1351 = vrcp.pop %v1301
        %v1352 = vmul.f32 1.0, %v1351
        %v1353 = vrcp.pop %v1302
        %v1354 = vmul.f32 1.0, %v1353
        %v1355 = vrcp.pop %v1303
        %v1356 = vmul.f32 1.0, %v1355
        %v1357 = vrcp.pop %v1304
        %v1358 = vmul.f32 1.0, %v1357
        %v1359 = vrcp.pop %v1305
        %v1360 = vmul.f32 1.0, %v1359
        %v1361 = vrcp.pop %v1306
        %v1362 = vmul.f32 1.0, %v1361
        %v1363 = vrcp.pop %v1307
        %v1364 = vmul.f32 1.0, %v1363
        %v1365 = vrcp.pop %v1308
        %v1366 = vmul.f32 1.0, %v1365
        %v1367 = vrcp.pop %v1309
        %v1368 = vmul.f32 1.0, %v1367
        %v1369 = vrcp.pop %v1310
        %v1370 = vmul.f32 1.0, %v1369
        %v1371 = vrcp.pop %v1311
        %v1372 = vmul.f32 1.0, %v1371
        %v1373 = vrcp.pop %v1312
        %v1374 = vmul.f32 1.0, %v1373
        %v1375 = vrcp.pop %v1313
        %v1376 = vmul.f32 1.0, %v1375
        %v1377 = vrcp.pop %v1314
        %v1378 = vmul.f32 1.0, %v1377
        %v1379 = vunpack.c.l.bf16 %v304
        %v1380 = vunpack.c.l.bf16 %v305
        %v1381 = vunpack.c.l.bf16 %v306
        %v1382 = vunpack.c.l.bf16 %v307
        %v1383 = vunpack.c.l.bf16 %v308
        %v1384 = vunpack.c.l.bf16 %v309
        %v1385 = vunpack.c.l.bf16 %v310
        %v1386 = vunpack.c.l.bf16 %v311
        %v1387 = vunpack.c.l.bf16 %v312
        %v1388 = vunpack.c.l.bf16 %v313
        %v1389 = vunpack.c.l.bf16 %v314
        %v1390 = vunpack.c.l.bf16 %v315
        %v1391 = vunpack.c.l.bf16 %v316
        %v1392 = vunpack.c.l.bf16 %v317
        %v1393 = vunpack.c.l.bf16 %v318
        %v1394 = vunpack.c.l.bf16 %v319
        %v1395 = vunpack.c.l.bf16 %v320
        %v1396 = vunpack.c.l.bf16 %v321
        %v1397 = vunpack.c.l.bf16 %v322
        %v1398 = vunpack.c.l.bf16 %v323
        %v1399 = vunpack.c.l.bf16 %v324
        %v1400 = vunpack.c.l.bf16 %v325
        %v1401 = vunpack.c.l.bf16 %v326
        %v1402 = vunpack.c.l.bf16 %v327
        %v1403 = vunpack.c.l.bf16 %v328
        %v1404 = vunpack.c.l.bf16 %v329
        %v1405 = vunpack.c.l.bf16 %v330
        %v1406 = vunpack.c.l.bf16 %v331
        %v1407 = vunpack.c.l.bf16 %v332
        %v1408 = vunpack.c.l.bf16 %v333
        %v1409 = vunpack.c.l.bf16 %v334
        %v1410 = vunpack.c.l.bf16 %v335
        %v1411 = vmul.f32 %v1379, %v1316
        %v1412 = vmul.f32 %v1380, %v1318
        %v1413 = vmul.f32 %v1381, %v1320
        %v1414 = vmul.f32 %v1382, %v1322
        %v1415 = vmul.f32 %v1383, %v1324
        %v1416 = vmul.f32 %v1384, %v1326
        %v1417 = vmul.f32 %v1385, %v1328
        %v1418 = vmul.f32 %v1386, %v1330
        %v1419 = vmul.f32 %v1387, %v1332
        %v1420 = vmul.f32 %v1388, %v1334
        %v1421 = vmul.f32 %v1389, %v1336
        %v1422 = vmul.f32 %v1390, %v1338
        %v1423 = vmul.f32 %v1391, %v1340
        %v1424 = vmul.f32 %v1392, %v1342
        %v1425 = vmul.f32 %v1393, %v1344
        %v1426 = vmul.f32 %v1394, %v1346
        %v1427 = vmul.f32 %v1395, %v1348
        %v1428 = vmul.f32 %v1396, %v1350
        %v1429 = vmul.f32 %v1397, %v1352
        %v1430 = vmul.f32 %v1398, %v1354
        %v1431 = vmul.f32 %v1399, %v1356
        %v1432 = vmul.f32 %v1400, %v1358
        %v1433 = vmul.f32 %v1401, %v1360
        %v1434 = vmul.f32 %v1402, %v1362
        %v1435 = vmul.f32 %v1403, %v1364
        %v1436 = vmul.f32 %v1404, %v1366
        %v1437 = vmul.f32 %v1405, %v1368
        %v1438 = vmul.f32 %v1406, %v1370
        %v1439 = vmul.f32 %v1407, %v1372
        %v1440 = vmul.f32 %v1408, %v1374
        %v1441 = vmul.f32 %v1409, %v1376
        %v1442 = vmul.f32 %v1410, %v1378
        %1443 = vst.msk [vmem:[%s289] sm:$0xff] %vm468, %v1411
        %1444 = vst.msk [vmem:[%s289 + $0x8] sm:$0xff] %vm468, %v1412
        %1445 = vst.msk [vmem:[%s289 + $0x10] sm:$0xff] %vm468, %v1413
        %1446 = vst.msk [vmem:[%s289 + $0x18] sm:$0xff] %vm468, %v1414
        %1447 = vst.msk [vmem:[%s289 + $0x20] sm:$0xff] %vm468, %v1415
        %1448 = vst.msk [vmem:[%s289 + $0x28] sm:$0xff] %vm468, %v1416
        %1449 = vst.msk [vmem:[%s289 + $0x30] sm:$0xff] %vm468, %v1417
        %1450 = vst.msk [vmem:[%s289 + $0x38] sm:$0xff] %vm468, %v1418
        %1451 = vst.msk [vmem:[%s289 + $0x40] sm:$0xff] %vm468, %v1419
        %1452 = vst.msk [vmem:[%s289 + $0x48] sm:$0xff] %vm468, %v1420
        %1453 = vst.msk [vmem:[%s289 + $0x50] sm:$0xff] %vm468, %v1421
        %1454 = vst.msk [vmem:[%s289 + $0x58] sm:$0xff] %vm468, %v1422
        %1455 = vst.msk [vmem:[%s289 + $0x60] sm:$0xff] %vm468, %v1423
        %1456 = vst.msk [vmem:[%s289 + $0x68] sm:$0xff] %vm468, %v1424
        %1457 = vst.msk [vmem:[%s289 + $0x70] sm:$0xff] %vm468, %v1425
        %1458 = vst.msk [vmem:[%s289 + $0x78] sm:$0xff] %vm468, %v1426
        %1459 = vst.msk [vmem:[%s289 + $0x80] sm:$0xff] %vm468, %v1427
        %1460 = vst.msk [vmem:[%s289 + $0x88] sm:$0xff] %vm468, %v1428
        %1461 = vst.msk [vmem:[%s289 + $0x90] sm:$0xff] %vm468, %v1429
        %1462 = vst.msk [vmem:[%s289 + $0x98] sm:$0xff] %vm468, %v1430
        %1463 = vst.msk [vmem:[%s289 + $0xa0] sm:$0xff] %vm468, %v1431
        %1464 = vst.msk [vmem:[%s289 + $0xa8] sm:$0xff] %vm468, %v1432
        %1465 = vst.msk [vmem:[%s289 + $0xb0] sm:$0xff] %vm468, %v1433
        %1466 = vst.msk [vmem:[%s289 + $0xb8] sm:$0xff] %vm468, %v1434
        %1467 = vst.msk [vmem:[%s289 + $0xc0] sm:$0xff] %vm468, %v1435
        %1468 = vst.msk [vmem:[%s289 + $0xc8] sm:$0xff] %vm468, %v1436
        %1469 = vst.msk [vmem:[%s289 + $0xd0] sm:$0xff] %vm468, %v1437
        %1470 = vst.msk [vmem:[%s289 + $0xd8] sm:$0xff] %vm468, %v1438
        %1471 = vst.msk [vmem:[%s289 + $0xe0] sm:$0xff] %vm468, %v1439
        %1472 = vst.msk [vmem:[%s289 + $0xe8] sm:$0xff] %vm468, %v1440
        %1473 = vst.msk [vmem:[%s289 + $0xf0] sm:$0xff] %vm468, %v1441
        %1474 = vst.msk [vmem:[%s289 + $0xf8] sm:$0xff] %vm468, %v1442
        %s1475 = sand.u32 %s187, 1
        %s1476 = scalar_lea.sflag [#allocation4], %s1475
        %s1477 = sand.u32 %s187, 1
        %s1478 = smul.addr %s1477, 256
        %s1479 = scalar_lea.vmem [#allocation3], %s1478
        // Predicated region
        $region49: #{attention_block.1} parent=47 // pred_check
          %p1480 = pneg %p197
        $region50: #{attention_block.1} parent=47 // pred_check_branch
          %1482 = sbr.rel (%p1480) target = $region52
        $region51: #{attention_block.1} parent=47 // pred_region
          %s1483 = smul.u32 32, %s22
          %s1485 = ssub.s32 4096, 4096
          %1486 = vsyncadd %s1476, %s1485
          %s1487 = smul.addr %s1483, 128
          %s1488 = scalar_lea.hbm %s7, %s1487
          %s1489 = sshll.u32 %s1479, 4
          %s1490 = int_to_ptr.vmem [resolvable:$true] %s1489
          %1495 = dma.vmem_to_hbm [thread:$0]  %s1490, 4096, %s1488, %s1476, 128, 128, 8
        $region52: #{attention_block.1} parent=47 // pred_fallthru
          _
      $region48: #{attention_block.1} parent=5 // pred_fallthru
        _
      %p1496 = scmp.le.s32.totalorder 2, %s17
      // Predicated region
      $region53: #{attention_block.1} parent=5 // pred_check
        %p1497 = pneg %p1496
      $region54: #{attention_block.1} parent=5 // pred_check_branch
        %1499 = sbr.rel (%p1497) target = $region56
      $region55: #{attention_block.1} parent=5 // pred_region
        %s1500 = ssub.s32 %s17, 2
        // Predicated region
        $region57: #{attention_block.1} parent=55 // pred_check
          %p1501 = pneg %p203
        $region58: #{attention_block.1} parent=55 // pred_check_branch
          %1503 = sbr.rel (%p1501) target = $region60
        $region59: #{attention_block.1} parent=55 // pred_region
          %s1504 = sand.u32 %s188, 1
          %s1505 = scalar_lea.sflag [#allocation4], %s1504
          %s1506 = sand.u32 %s188, 1
          %s1507 = smul.addr %s1506, 256
          %s1508 = scalar_lea.vmem [#allocation3], %s1507
          %1509 = dma.done %s1505, 4096
        $region60: #{attention_block.1} parent=55 // pred_fallthru
          _
      $region56: #{attention_block.1} parent=5 // pred_fallthru
        _
    $region6: #{attention_block.1} parent=1 // loop_footer
      %s21 = sadd.s32 1, %s17
    $region7: #{attention_block.1} parent=1 // loop_footer_branch
      %16 = sbr.rel target = $region3
    $region8: #{attention_block.1} parent=1 // loop_exit
      _
    %1510 = vsyncpa [#allocation4], 1
    %s1511 = scalar_lea.sflag [#allocation4], 1
    %1512 = vsyncpa %s1511, 1

</llo_original>
